<compile_context>
chip_gen: v6e
topology: v6e:2x2x1
jax: 0.10.0
libtpu: 0.0.40
codegen_flags: <defaults>
</compile_context>

<pallas_src>
import functools

import jax
import jax.numpy as jnp
from jax.experimental import pallas as pl
from jax.experimental.pallas import tpu as pltpu


def _nonzero_taps(kH, kW, mask_type):
    """(kh, kw) positions whose PixelCNN mask entry is nonzero (static)."""
    cut = kW // 2 + (1 if mask_type == "B" else 0)
    taps = []
    for kh in range(kH):
        for kw in range(kW):
            if kh < kH // 2 or (kh == kH // 2 and kw < cut):
                taps.append((kh, kw))
    return tuple(taps)


def _masked_conv_kernel(x_ref, w_ref, o_ref, *, taps):
    # x_ref : (1, H_pad, W_pad, C)       one spatially pre-padded batch element
    # w_ref : (n_taps, C, o_blk)         non-masked taps, one O-block of lanes
    # o_ref : (1, H_out, W_out, o_blk)
    _, H_out, W_out, o_blk = o_ref.shape

    # Local (vreg) f32 accumulator -- no VMEM read-modify-write per tap.
    acc = jnp.zeros((H_out, W_out, o_blk), jnp.float32)
    # Unrolled over the small static set of *nonzero* taps only.
    for ti, (kh, kw) in enumerate(taps):
        patch = x_ref[0, kh:kh + H_out, kw:kw + W_out, :]   # (H_out, W_out, C)
        acc = acc + jnp.dot(patch, w_ref[ti],
                            preferred_element_type=jnp.float32)
    o_ref[...] = acc[None].astype(o_ref.dtype)               # single lane-dense store


def make_pixelcnn_mask(out_channels, in_channels, kH, kW, mask_type):
    """Mask with the same semantics as the PyTorch module (shape O, C, kH, kW)."""
    mask = jnp.ones((out_channels, in_channels, kH, kW), dtype=jnp.float32)
    start = kW // 2 + (1 if mask_type == "B" else 0)
    mask = mask.at[:, :, kH // 2, start:].set(0.0)
    mask = mask.at[:, :, kH // 2 + 1:, :].set(0.0)
    return mask


def masked_convolution_2d(x_nchw, weight_ocHW, mask_type, padding=(0, 0)):
    """Forward pass of MaskedConvolution2D (bias=False, stride=1, dilation=1).

    x_nchw      : (N, C, H, W)
    weight_ocHW : (O, C, kH, kW)  -- raw conv weight (mask applied here)
    returns     : (N, O, H_out, W_out)
    """
    N, C, H, W = x_nchw.shape
    O, C_w, kH, kW = weight_ocHW.shape
    assert C == C_w
    ph, pw = padding

    H_pad, W_pad = H + 2 * ph, W + 2 * pw
    H_out, W_out = H_pad - kH + 1, W_pad - kW + 1

    taps = _nonzero_taps(kH, kW, mask_type)
    n_taps = len(taps)
    if n_taps == 0:  # fully-masked kernel (e.g. 1x1 type 'A') -> all zeros
        return jnp.zeros((N, O, H_out, W_out), x_nchw.dtype)

    # Lane-dense output channels: pad O up to a multiple of 128, then tile the
    # padded O axis into blocks of at most 512 lanes per grid step.
    O_pad = ((O + 127) // 128) * 128
    o_block = min(O_pad, 512)
    n_oblk = O_pad // o_block

    # Pack weights: keep only the non-masked taps (== applying the mask),
    # channels-last, out-channels zero-padded to O_pad.  Shape (n_taps, C, O_pad).
    w_taps = jnp.stack([weight_ocHW[:, :, kh, kw] for kh, kw in taps], axis=0)  # (t, O, C)
    w_taps = jnp.transpose(w_taps, (0, 2, 1))                                   # (t, C, O)
    w_taps = jnp.pad(w_taps, ((0, 0), (0, 0), (0, O_pad - O)))

    # NCHW -> NHWC + spatial zero padding (wrapper glue; production code should
    # stay NHWC end-to-end to avoid these extra HBM round trips).
    x_nhwc = jnp.transpose(x_nchw, (0, 2, 3, 1))
    x_padded = jnp.pad(x_nhwc, ((0, 0), (ph, ph), (pw, pw), (0, 0)))

    kernel = functools.partial(_masked_conv_kernel, taps=taps)

    itemsize = x_padded.dtype.itemsize
    cost = pl.CostEstimate(
        flops=2 * N * H_out * W_out * n_taps * C * O_pad,
        transcendentals=0,
        bytes_accessed=(N * n_oblk * x_padded[0].size * itemsize
                        + N * w_taps.size * w_taps.dtype.itemsize
                        + N * H_out * W_out * O_pad * itemsize),
    )

    out_nhwc = pl.pallas_call(
        kernel,
        out_shape=jax.ShapeDtypeStruct((N, H_out, W_out, O_pad), x_nchw.dtype),
        grid_spec=pltpu.PrefetchScalarGridSpec(
            num_scalar_prefetch=0,
            grid=(N, n_oblk),
            in_specs=[
                # Whole padded image of one batch element per step.
                pl.BlockSpec((1, H_pad, W_pad, C), lambda n, ob: (n, 0, 0, 0)),
                # Only the current O-block of the packed weights.
                pl.BlockSpec((n_taps, C, o_block), lambda n, ob: (0, 0, ob)),
            ],
            out_specs=pl.BlockSpec((1, H_out, W_out, o_block),
                                   lambda n, ob: (n, 0, 0, ob)),
        ),
        compiler_params=pltpu.CompilerParams(
            dimension_semantics=("parallel", "parallel"),
            vmem_limit_bytes=32 * 1024 * 1024),
        cost_estimate=cost,
    )(x_padded, w_taps)

    # Drop the channel padding, NHWC -> NCHW.
    return jnp.transpose(out_nhwc[..., :O], (0, 3, 1, 2))


def _reference_conv(x_nchw, weight_ocHW, mask_type, padding):
    """Pure-JAX reference (lax conv with the full mask) for correctness checking."""
    mask = make_pixelcnn_mask(*weight_ocHW.shape, mask_type)
    w = weight_ocHW * mask
    return jax.lax.conv_general_dilated(
        x_nchw, w, window_strides=(1, 1),
        padding=((padding[0], padding[0]), (padding[1], padding[1])),
        dimension_numbers=("NCHW", "OIHW", "NCHW"))


if __name__ == "__main__":
    # Small, deterministic problem consistent with the module:
    #   batch=2, in_channels=4, out_channels=8, spatial=16x16, kernel=3x3, pad=1
    N, C, O = 2, 4, 8
    H = W = 16
    kH = kW = 3
    padding = (1, 1)

    key = jax.random.PRNGKey(0)
    kx, kw = jax.random.split(key)
    x = jax.random.normal(kx, (N, C, H, W), dtype=jnp.float32)
    # Deterministic weight init (uniform, like nn.Conv2d's default fan-in bound).
    bound = 1.0 / jnp.sqrt(C * kH * kW)
    weight = jax.random.uniform(kw, (O, C, kH, kW), dtype=jnp.float32,
                                minval=-bound, maxval=bound)

    ok = True
    for mask_type in ("A", "B"):
        out = masked_convolution_2d(x, weight, mask_type, padding)
        out = jax.block_until_ready(out)
        ref = _reference_conv(x, weight, mask_type, padding)
        ok = ok and bool(jnp.allclose(out, ref, atol=1e-4, rtol=1e-4))
        assert out.shape == (N, O, H, W), out.shape

    if ok:
        print("KERNEL_OK")
    else:
        print("KERNEL_MISMATCH")
</pallas_src>

<mosaic_0001>
module attributes {stable_mosaic.version = 11 : i64} {
  func.func @_masked_conv_kernel(%arg0: i32, %arg1: i32, %arg2: memref<1x18x18x4xf32, #tpu.memory_space<vmem>>, %arg3: memref<4x4x128xf32, #tpu.memory_space<vmem>>, %arg4: memref<1x16x16x128xf32, #tpu.memory_space<vmem>>) attributes {dimension_semantics = [#tpu.dimension_semantics<parallel>, #tpu.dimension_semantics<parallel>], iteration_bounds = array<i64: 2, 1>, scalar_prefetch = 0 : i64, scratch_operands = 0 : i64, tpu.core_type = #tpu.core_type<tc>, window_params = [{transform_indices = @transform_0, window_bounds = array<i64: 1, 18, 18, 4>}, {transform_indices = @transform_1, window_bounds = array<i64: 4, 4, 128>}, {transform_indices = @transform_2, window_bounds = array<i64: 1, 16, 16, 128>}]} {
    %cst = arith.constant 0.000000e+00 : f32
    %0 = vector.broadcast %cst : f32 to vector<16x16x128xf32>
    %c0 = arith.constant 0 : index
    %c0_0 = arith.constant 0 : index
    %c0_1 = arith.constant 0 : index
    %c0_2 = arith.constant 0 : index
    %1 = vector.load %arg2[%c0, %c0_0, %c0_1, %c0_2] : memref<1x18x18x4xf32, #tpu.memory_space<vmem>>, vector<1x16x16x4xf32>
    %2 = vector.shape_cast %1 : vector<1x16x16x4xf32> to vector<16x16x4xf32>
    %c0_3 = arith.constant 0 : index
    %c0_4 = arith.constant 0 : index
    %c0_5 = arith.constant 0 : index
    %3 = vector.load %arg3[%c0_3, %c0_4, %c0_5] : memref<4x4x128xf32, #tpu.memory_space<vmem>>, vector<1x4x128xf32>
    %4 = vector.shape_cast %3 : vector<1x4x128xf32> to vector<4x128xf32>
    %cst_6 = arith.constant dense<0.000000e+00> : vector<16x16x128xf32>
    %5 = tpu.matmul %2, %4, %cst_6 {dimension_numbers = #tpu.dot_dimension_numbers<[2], [0], [0, 1], [1], [0, 0, 0, 1, 1, 1], [], []>} : vector<16x16x4xf32>, vector<4x128xf32>, vector<16x16x128xf32> -> vector<16x16x128xf32>
    %6 = arith.addf %0, %5 : vector<16x16x128xf32>
    %c0_7 = arith.constant 0 : index
    %c0_8 = arith.constant 0 : index
    %c1 = arith.constant 1 : index
    %c0_9 = arith.constant 0 : index
    %7 = vector.load %arg2[%c0_7, %c0_8, %c1, %c0_9] : memref<1x18x18x4xf32, #tpu.memory_space<vmem>>, vector<1x16x16x4xf32>
    %8 = vector.shape_cast %7 : vector<1x16x16x4xf32> to vector<16x16x4xf32>
    %c1_10 = arith.constant 1 : index
    %c0_11 = arith.constant 0 : index
    %c0_12 = arith.constant 0 : index
    %9 = vector.load %arg3[%c1_10, %c0_11, %c0_12] : memref<4x4x128xf32, #tpu.memory_space<vmem>>, vector<1x4x128xf32>
    %10 = vector.shape_cast %9 : vector<1x4x128xf32> to vector<4x128xf32>
    %cst_13 = arith.constant dense<0.000000e+00> : vector<16x16x128xf32>
    %11 = tpu.matmul %8, %10, %cst_13 {dimension_numbers = #tpu.dot_dimension_numbers<[2], [0], [0, 1], [1], [0, 0, 0, 1, 1, 1], [], []>} : vector<16x16x4xf32>, vector<4x128xf32>, vector<16x16x128xf32> -> vector<16x16x128xf32>
    %12 = arith.addf %6, %11 : vector<16x16x128xf32>
    %c0_14 = arith.constant 0 : index
    %c0_15 = arith.constant 0 : index
    %c2 = arith.constant 2 : index
    %c0_16 = arith.constant 0 : index
    %13 = vector.load %arg2[%c0_14, %c0_15, %c2, %c0_16] : memref<1x18x18x4xf32, #tpu.memory_space<vmem>>, vector<1x16x16x4xf32>
    %14 = vector.shape_cast %13 : vector<1x16x16x4xf32> to vector<16x16x4xf32>
    %c2_17 = arith.constant 2 : index
    %c0_18 = arith.constant 0 : index
    %c0_19 = arith.constant 0 : index
    %15 = vector.load %arg3[%c2_17, %c0_18, %c0_19] : memref<4x4x128xf32, #tpu.memory_space<vmem>>, vector<1x4x128xf32>
    %16 = vector.shape_cast %15 : vector<1x4x128xf32> to vector<4x128xf32>
    %cst_20 = arith.constant dense<0.000000e+00> : vector<16x16x128xf32>
    %17 = tpu.matmul %14, %16, %cst_20 {dimension_numbers = #tpu.dot_dimension_numbers<[2], [0], [0, 1], [1], [0, 0, 0, 1, 1, 1], [], []>} : vector<16x16x4xf32>, vector<4x128xf32>, vector<16x16x128xf32> -> vector<16x16x128xf32>
    %18 = arith.addf %12, %17 : vector<16x16x128xf32>
    %c0_21 = arith.constant 0 : index
    %c1_22 = arith.constant 1 : index
    %c0_23 = arith.constant 0 : index
    %c0_24 = arith.constant 0 : index
    %19 = vector.load %arg2[%c0_21, %c1_22, %c0_23, %c0_24] : memref<1x18x18x4xf32, #tpu.memory_space<vmem>>, vector<1x16x16x4xf32>
    %20 = vector.shape_cast %19 : vector<1x16x16x4xf32> to vector<16x16x4xf32>
    %c3 = arith.constant 3 : index
    %c0_25 = arith.constant 0 : index
    %c0_26 = arith.constant 0 : index
    %21 = vector.load %arg3[%c3, %c0_25, %c0_26] : memref<4x4x128xf32, #tpu.memory_space<vmem>>, vector<1x4x128xf32>
    %22 = vector.shape_cast %21 : vector<1x4x128xf32> to vector<4x128xf32>
    %cst_27 = arith.constant dense<0.000000e+00> : vector<16x16x128xf32>
    %23 = tpu.matmul %20, %22, %cst_27 {dimension_numbers = #tpu.dot_dimension_numbers<[2], [0], [0, 1], [1], [0, 0, 0, 1, 1, 1], [], []>} : vector<16x16x4xf32>, vector<4x128xf32>, vector<16x16x128xf32> -> vector<16x16x128xf32>
    %24 = arith.addf %18, %23 : vector<16x16x128xf32>
    %25 = vector.shape_cast %24 : vector<16x16x128xf32> to vector<1x16x16x128xf32>
    %c0_28 = arith.constant 0 : index
    %c0_29 = arith.constant 0 : index
    %c0_30 = arith.constant 0 : index
    %c0_31 = arith.constant 0 : index
    %26 = vector.load %arg4[%c0_28, %c0_29, %c0_30, %c0_31] : memref<1x16x16x128xf32, #tpu.memory_space<vmem>>, vector<1x16x16x128xf32>
    tpu.vector_store %arg4[%c0_28, %c0_29, %c0_30, %c0_31], %25 {strides = array<i32>} : memref<1x16x16x128xf32, #tpu.memory_space<vmem>>, vector<1x16x16x128xf32>,
    return
  }
  func.func @transform_0(%arg0: i32, %arg1: i32) -> (i32, i32, i32, i32) {
    %c0_i32 = arith.constant 0 : i32
    %c0_i32_0 = arith.constant 0 : i32
    %c0_i32_1 = arith.constant 0 : i32
    %c0_i32_2 = arith.constant 0 : i32
    return %arg0, %c0_i32, %c0_i32_0, %c0_i32_1 : i32, i32, i32, i32
  }
  func.func @transform_1(%arg0: i32, %arg1: i32) -> (i32, i32, i32) {
    %c0_i32 = arith.constant 0 : i32
    %c0_i32_0 = arith.constant 0 : i32
    %c0_i32_1 = arith.constant 0 : i32
    return %c0_i32, %c0_i32_0, %arg1 : i32, i32, i32
  }
  func.func @transform_2(%arg0: i32, %arg1: i32) -> (i32, i32, i32, i32) {
    %c0_i32 = arith.constant 0 : i32
    %c0_i32_0 = arith.constant 0 : i32
    %c0_i32_1 = arith.constant 0 : i32
    return %arg0, %c0_i32, %c0_i32_0, %arg1 : i32, i32, i32, i32
  }
}

</mosaic_0001>

<llo_original>
// kernel: tpu_custom_call.1
$region0: #{tpu_custom_call.1}
  #allocation0 [shape = 'u32[]', space=smem, size = 0x4, offset = 0x4, fixed_abs, tag = 'smem constant byte address 0x4 - core index']
  #allocation1 [shape = 'u32[144,128]{1,0:T(1,128)}', space=vmem, size = 0x12000, scoped, tag = 'internal scratch']
  %s0 = inlined_call_operand.vmem [shape: f32[2,18,18,4], index: 0, kind: input, shape index: {}]
  %s1 = inlined_call_operand.vmem [shape: f32[4,4,128], index: 1, kind: input, shape index: {}]
  %s2 = inlined_call_operand.hbm [shape: f32[2,16,16,128], index: 2, kind: output, shape index: {}]
  %s3 = sld [smem:[#allocation0]]
  $region41: #{tpu_custom_call.1} parent=0
    _
  %s5 = ssub.s32 1, %s3
  %s6 = scalar_select 0, %s5, %s3
  $region1: #{tpu_custom_call.1} parent=0
    #allocation2 [shape = 'u8[262144]{0}', space=vmem, size = 0x40000, scoped, tag = 'output window, operand 0']
    #allocation3 [shape = 's32[2]{0}', space=sflag, size = 0x8, scoped, tag = 'scoped memory for tpu_custom_call.1']
    %7 = vsyncpa [#allocation3], 0
    %s8 = scalar_lea.sflag [#allocation3], 1
    %9 = vsyncpa %s8, 0
    loop: start=0, step=1, limit=4
    $region2: #{tpu_custom_call.1} parent=1 // loop_pre_header
      _
    $region3: #{tpu_custom_call.1} parent=1 // loop_header
      %s11 = sphi 0, %s15
      %p12 = scmp.ge.s32.totalorder %s11, 4
      %s18 = sphi 0, %s30
      %s19 = sphi 0, %s26
      %s20 = sphi 0, %s18
      %s21 = sphi 0, %s19
      %s22 = sphi 0, %s20
      %s23 = sphi 0, %s21
      %s33 = sphi 0, %s35
      %s36 = sphi 0, %s33
      %s37 = sphi 0, %s36
      %s53 = sphi 0, %s37
      %s59 = sphi 0, %s61
      %s62 = sphi 0, %s59
      %s63 = sphi 0, %s62
      %s79 = sphi 0, %s63
      %s87 = sphi 0, %s89
      %s90 = sphi 0, %s87
      %s91 = sphi 0, %s90
      %s107 = sphi 0, %s91
    $region4: #{tpu_custom_call.1} parent=1 // loop_header_branch
      %14 = sbr.rel (%p12) target = $region8
    $region5: #{tpu_custom_call.1} parent=1 // loop_body
      %s16 = ssub.s32 %s11, 1
      %s17 = ssub.s32 %s11, 2
      %s24 = sadd.s32 1, %s19
      %p25 = scmp.ge.s32.totalorder %s24, 1
      %s26 = scalar_select %p25, 0, %s24
      %s27 = sadd.s32 1, %s18
      %s28 = scalar_select %p25, %s27, %s18
      %p29 = scmp.ge.s32.totalorder %s28, 2
      %s30 = scalar_select %p29, 0, %s28
      %s31 = ssub.s32 %s18, %s30
      %p32 = scmp.eq.s32.totalorder %s31, 0
      %s34 = sadd.s32 %s33, 1
      %s35 = scalar_select %p32, %s33, %s34
      %p38 = pneg %p32
      %p39 = scmp.eq.s32.totalorder %s11, 1
      %p40 = por %p38, %p39
      %p41 = scmp.ne.s32.totalorder %s33, %s36
      %p42 = scmp.eq.s32.totalorder %s11, 0
      %p43 = por %p41, %p42
      %p44 = scmp.ne.s32.totalorder %s33, %s36
      %p45 = scmp.eq.s32.totalorder %s16, 1
      %p46 = por %p44, %p45
      %p47 = scmp.ne.s32.totalorder %s36, %s37
      %p48 = scmp.eq.s32.totalorder %s16, 0
      %p49 = por %p47, %p48
      %p50 = scmp.ne.s32.totalorder %s36, %s37
      %p51 = scmp.eq.s32.totalorder %s17, 1
      %p52 = por %p50, %p51
      %p54 = scmp.ne.s32.totalorder %s37, %s53
      %p55 = scmp.eq.s32.totalorder %s17, 0
      %p56 = por %p54, %p55
      %s57 = ssub.s32 %s19, %s26
      %p58 = scmp.eq.s32.totalorder %s57, 0
      %s60 = sadd.s32 %s59, 1
      %s61 = scalar_select %p58, %s59, %s60
      %p64 = pneg %p58
      %p65 = scmp.eq.s32.totalorder %s11, 1
      %p66 = por %p64, %p65
      %p67 = scmp.ne.s32.totalorder %s59, %s62
      %p68 = scmp.eq.s32.totalorder %s11, 0
      %p69 = por %p67, %p68
      %p70 = scmp.ne.s32.totalorder %s59, %s62
      %p71 = scmp.eq.s32.totalorder %s16, 1
      %p72 = por %p70, %p71
      %p73 = scmp.ne.s32.totalorder %s62, %s63
      %p74 = scmp.eq.s32.totalorder %s16, 0
      %p75 = por %p73, %p74
      %p76 = scmp.ne.s32.totalorder %s62, %s63
      %p77 = scmp.eq.s32.totalorder %s17, 1
      %p78 = por %p76, %p77
      %p80 = scmp.ne.s32.totalorder %s63, %s79
      %p81 = scmp.eq.s32.totalorder %s17, 0
      %p82 = por %p80, %p81
      %s83 = ssub.s32 %s18, %s30
      %s84 = ssub.s32 %s19, %s26
      %s85 = sor.u32 %s83, %s84
      %p86 = scmp.eq.s32.totalorder %s85, 0
      %s88 = sadd.s32 %s87, 1
      %s89 = scalar_select %p86, %s87, %s88
      %p92 = pneg %p86
      %p93 = scmp.eq.s32.totalorder %s11, 1
      %p94 = por %p92, %p93
      %p95 = scmp.ne.s32.totalorder %s87, %s90
      %p96 = scmp.eq.s32.totalorder %s11, 0
      %p97 = por %p95, %p96
      %p98 = scmp.ne.s32.totalorder %s87, %s90
      %p99 = scmp.eq.s32.totalorder %s16, 1
      %p100 = por %p98, %p99
      %p101 = scmp.ne.s32.totalorder %s90, %s91
      %p102 = scmp.eq.s32.totalorder %s16, 0
      %p103 = por %p101, %p102
      %p104 = scmp.ne.s32.totalorder %s90, %s91
      %p105 = scmp.eq.s32.totalorder %s17, 1
      %p106 = por %p104, %p105
      %p108 = scmp.ne.s32.totalorder %s91, %s107
      %p109 = scmp.eq.s32.totalorder %s17, 0
      %p110 = por %p108, %p109
      %p111 = scmp.le.s32.totalorder 1, %s11
      %p112 = scmp.lt.s32.totalorder %s11, 3
      %p113 = pnand %p111, %p112
      %p114 = pneg %p113
      // Predicated region
      $region9: #{tpu_custom_call.1} parent=5 // pred_check
        _
      $region10: #{tpu_custom_call.1} parent=5 // pred_check_branch
        %116 = sbr.rel (%p113) target = $region12
      $region11: #{tpu_custom_call.1} parent=5 // pred_region
        %s117 = ssub.s32 %s11, 1
        // Predicated region
        $region13: #{tpu_custom_call.1} parent=11 // pred_check
          %p118 = pneg %p75
        $region14: #{tpu_custom_call.1} parent=11 // pred_check_branch
          %120 = sbr.rel (%p118) target = $region16
        $region15: #{tpu_custom_call.1} parent=11 // pred_region
          %p121 = scmp.lt.s32.totalorder %s21, 0
          %s122 = scalar_select %p121, %s21, 0
          %s123 = smul.addr %s122, 4
          %s124 = scalar_lea.vmem %s1, %s123
        $region16: #{tpu_custom_call.1} parent=11 // pred_fallthru
          _
      $region12: #{tpu_custom_call.1} parent=5 // pred_fallthru
        _
      %p125 = scmp.lt.s32.totalorder %s11, 2
      // Predicated region
      $region17: #{tpu_custom_call.1} parent=5 // pred_check
        %p126 = pneg %p125
      $region18: #{tpu_custom_call.1} parent=5 // pred_check_branch
        %128 = sbr.rel (%p126) target = $region20
      $region19: #{tpu_custom_call.1} parent=5 // pred_region
        // Predicated region
        $region21: #{tpu_custom_call.1} parent=19 // pred_check
          %p129 = pneg %p43
        $region22: #{tpu_custom_call.1} parent=19 // pred_check_branch
          %131 = sbr.rel (%p129) target = $region24
        $region23: #{tpu_custom_call.1} parent=19 // pred_region
          %p132 = scmp.lt.s32.totalorder %s18, 1
          %s133 = scalar_select %p132, %s18, 1
          %s134 = smul.addr %s133, 54
          %s135 = smul.addr %s134, 8
          %s136 = scalar_lea.vmem %s0, %s135
        $region24: #{tpu_custom_call.1} parent=19 // pred_fallthru
          _
      $region20: #{tpu_custom_call.1} parent=5 // pred_fallthru
        _
      %p137 = scmp.le.s32.totalorder 1, %s11
      %p138 = scmp.lt.s32.totalorder %s11, 3
      %p139 = pnand %p137, %p138
      %p140 = pneg %p139
      // Predicated region
      $region25: #{tpu_custom_call.1} parent=5 // pred_check
        _
      $region26: #{tpu_custom_call.1} parent=5 // pred_check_branch
        %142 = sbr.rel (%p139) target = $region28
      $region27: #{tpu_custom_call.1} parent=5 // pred_region
        %s143 = ssub.s32 %s11, 1
        %p144 = scmp.lt.s32.totalorder %s20, 1
        %s145 = scalar_select %p144, %s20, 1
        %s146 = smul.addr %s145, 54
        %s147 = smul.addr %s146, 8
        %s148 = scalar_lea.vmem %s0, %s147
        %p149 = pneg %p49
        %p150 = pneg %p46
        %p151 = scmp.lt.s32.totalorder %s21, 0
        %s152 = scalar_select %p151, %s21, 0
        %s153 = smul.addr %s152, 4
        %s154 = scalar_lea.vmem %s1, %s153
        %p155 = pneg %p75
        %p156 = pneg %p72
        %p157 = pneg %p103
        %p158 = pneg %p100
        %s159 = sand.u32 %s90, 1
        %s160 = scalar_lea.sflag [#allocation3], %s159
        %s161 = sand.u32 %s90, 1
        %s162 = smul.addr %s161, 256
        %s163 = scalar_lea.vmem [#allocation2], %s162
        %p164 = scmp.lt.s32.totalorder %s20, 1
        %s165 = scalar_select %p164, %s20, 1
        %s166 = smul.addr %s165, 54
        %s167 = smul.addr %s166, 8
        %s168 = scalar_lea.vmem %s0, %s167
        %p169 = scmp.lt.s32.totalorder %s21, 0
        %s170 = scalar_select %p169, %s21, 0
        %s171 = smul.addr %s170, 4
        %s172 = scalar_lea.vmem %s1, %s171
        %v173 = vld [vmem:[%s168] sm:$0xff]
        %v174 = vld [vmem:[%s168 + $0x8] sm:$0xff]
        %v175 = vld [vmem:[%s168 + $0x18] sm:$0xff]
        %v176 = vld [vmem:[%s168 + $0x20] sm:$0xff]
        %v177 = vld [vmem:[%s168 + $0x30] sm:$0xff]
        %v178 = vld [vmem:[%s168 + $0x38] sm:$0xff]
        %v179 = vld [vmem:[%s168 + $0x48] sm:$0xff]
        %v180 = vld [vmem:[%s168 + $0x50] sm:$0xff]
        %v181 = vld [vmem:[%s168 + $0x60] sm:$0xff]
        %v182 = vld [vmem:[%s168 + $0x68] sm:$0xff]
        %v183 = vld [vmem:[%s168 + $0x78] sm:$0xff]
        %v184 = vld [vmem:[%s168 + $0x80] sm:$0xff]
        %v185 = vld [vmem:[%s168 + $0x90] sm:$0xff]
        %v186 = vld [vmem:[%s168 + $0x98] sm:$0xff]
        %v187 = vld [vmem:[%s168 + $0xa8] sm:$0xff]
        %v188 = vld [vmem:[%s168 + $0xb0] sm:$0xff]
        %v189 = vld [vmem:[%s168 + $0xc0] sm:$0xff]
        %v190 = vld [vmem:[%s168 + $0xc8] sm:$0xff]
        %v191 = vld [vmem:[%s168 + $0xd8] sm:$0xff]
        %v192 = vld [vmem:[%s168 + $0xe0] sm:$0xff]
        %v193 = vld [vmem:[%s168 + $0xf0] sm:$0xff]
        %v194 = vld [vmem:[%s168 + $0xf8] sm:$0xff]
        %v195 = vld [vmem:[%s168 + $0x108] sm:$0xff]
        %v196 = vld [vmem:[%s168 + $0x110] sm:$0xff]
        %v197 = vld [vmem:[%s168 + $0x120] sm:$0xff]
        %v198 = vld [vmem:[%s168 + $0x128] sm:$0xff]
        %v199 = vld [vmem:[%s168 + $0x138] sm:$0xff]
        %v200 = vld [vmem:[%s168 + $0x140] sm:$0xff]
        %v201 = vld [vmem:[%s168 + $0x150] sm:$0xff]
        %v202 = vld [vmem:[%s168 + $0x158] sm:$0xff]
        %v203 = vld [vmem:[%s168 + $0x168] sm:$0xff]
        %v204 = vld [vmem:[%s168 + $0x170] sm:$0xff]
        %v205 = vld [vmem:[%s172] sm:$0xf]
        %v206 = vld [vmem:[%s168 + $0x1] sm:$0xff]
        %v207 = vld [vmem:[%s168 + $0x9] sm:$0xff]
        %v208 = vld [vmem:[%s168 + $0x19] sm:$0xff]
        %v209 = vld [vmem:[%s168 + $0x21] sm:$0xff]
        %v210 = vld [vmem:[%s168 + $0x31] sm:$0xff]
        %v211 = vld [vmem:[%s168 + $0x39] sm:$0xff]
        %v212 = vld [vmem:[%s168 + $0x49] sm:$0xff]
        %v213 = vld [vmem:[%s168 + $0x51] sm:$0xff]
        %v214 = vld [vmem:[%s168 + $0x61] sm:$0xff]
        %v215 = vld [vmem:[%s168 + $0x69] sm:$0xff]
        %v216 = vld [vmem:[%s168 + $0x79] sm:$0xff]
        %v217 = vld [vmem:[%s168 + $0x81] sm:$0xff]
        %v218 = vld [vmem:[%s168 + $0x91] sm:$0xff]
        %v219 = vld [vmem:[%s168 + $0x99] sm:$0xff]
        %v220 = vld [vmem:[%s168 + $0xa9] sm:$0xff]
        %v221 = vld [vmem:[%s168 + $0xb1] sm:$0xff]
        %v222 = vld [vmem:[%s168 + $0xc1] sm:$0xff]
        %v223 = vld [vmem:[%s168 + $0xc9] sm:$0xff]
        %v224 = vld [vmem:[%s168 + $0xd9] sm:$0xff]
        %v225 = vld [vmem:[%s168 + $0xe1] sm:$0xff]
        %v226 = vld [vmem:[%s168 + $0xf1] sm:$0xff]
        %v227 = vld [vmem:[%s168 + $0xf9] sm:$0xff]
        %v228 = vld [vmem:[%s168 + $0x109] sm:$0xff]
        %v229 = vld [vmem:[%s168 + $0x111] sm:$0xff]
        %v230 = vld [vmem:[%s168 + $0x121] sm:$0xff]
        %v231 = vld [vmem:[%s168 + $0x129] sm:$0xff]
        %v232 = vld [vmem:[%s168 + $0x139] sm:$0xff]
        %v233 = vld [vmem:[%s168 + $0x141] sm:$0xff]
        %v234 = vld [vmem:[%s168 + $0x151] sm:$0xff]
        %v235 = vld [vmem:[%s168 + $0x159] sm:$0xff]
        %v236 = vld [vmem:[%s168 + $0x169] sm:$0xff]
        %v237 = vld [vmem:[%s168 + $0x171] sm:$0xff]
        %s238 = scalar_lea.vmem %s172, 4
        %v239 = vld [vmem:[%s238] sm:$0xf]
        %vm240 = vcmask 31744
        %v242 = vsel %vm240, %v206, 0
        %v245 = vsel %vm240, %v207, 0
        %v248 = vsel %vm240, %v208, 0
        %v251 = vsel %vm240, %v209, 0
        %v254 = vsel %vm240, %v210, 0
        %v257 = vsel %vm240, %v211, 0
        %v260 = vsel %vm240, %v212, 0
        %v263 = vsel %vm240, %v213, 0
        %v266 = vsel %vm240, %v214, 0
        %v269 = vsel %vm240, %v215, 0
        %v272 = vsel %vm240, %v216, 0
        %v275 = vsel %vm240, %v217, 0
        %v278 = vsel %vm240, %v218, 0
        %v281 = vsel %vm240, %v219, 0
        %v284 = vsel %vm240, %v220, 0
        %v287 = vsel %vm240, %v221, 0
        %v290 = vsel %vm240, %v222, 0
        %v293 = vsel %vm240, %v223, 0
        %v296 = vsel %vm240, %v224, 0
        %v299 = vsel %vm240, %v225, 0
        %v302 = vsel %vm240, %v226, 0
        %v305 = vsel %vm240, %v227, 0
        %v308 = vsel %vm240, %v228, 0
        %v311 = vsel %vm240, %v229, 0
        %v314 = vsel %vm240, %v230, 0
        %v317 = vsel %vm240, %v231, 0
        %v320 = vsel %vm240, %v232, 0
        %v323 = vsel %vm240, %v233, 0
        %v326 = vsel %vm240, %v234, 0
        %v329 = vsel %vm240, %v235, 0
        %v332 = vsel %vm240, %v236, 0
        %v335 = vsel %vm240, %v237, 0
        %vm337 = vcmask 1043456
        %v339 = vsel %vm337, %v239, 0
        %341 = vmatprep.subr.mxu0 0.0
        %342 = vmatpush1.msra.mxu0 0.0
        %343 = vmatprep.subr.mxu0 0.0
        %344 = vmatpush1.msra.mxu0 0.0
        %345 = vmatprep.subr.mxu0 0.0
        %346 = vmatpush1.msra.mxu0 0.0
        %347 = vmatprep.subr.mxu0 0.0
        %348 = vmatpush1.msra.mxu0 0.0
        %349 = vmatprep.subr.mxu0 0.0
        %350 = vmatpush1.msra.mxu0 0.0
        %351 = vmatprep.subr.mxu0 0.0
        %352 = vmatpush1.msra.mxu0 0.0
        %353 = vmatprep.subr.mxu0 0.0
        %354 = vmatpush1.msra.mxu0 0.0
        %355 = vmatprep.subr.mxu0 0.0
        %356 = vmatpush1.msra.mxu0 0.0
        %357 = vmatprep.subr.mxu0 0.0
        %358 = vmatpush1.msra.mxu0 0.0
        %359 = vmatprep.subr.mxu0 0.0
        %360 = vmatpush1.msra.mxu0 0.0
        %361 = vmatprep.subr.mxu0 0.0
        %362 = vmatpush1.msra.mxu0 0.0
        %363 = vmatprep.subr.mxu0 0.0
        %364 = vmatpush1.msra.mxu0 0.0
        %365 = vmatprep.subr.mxu0 0.0
        %366 = vmatpush1.msra.mxu0 0.0
        %367 = vmatprep.subr.mxu0 0.0
        %368 = vmatpush1.msra.mxu0 0.0
        %369 = vmatprep.subr.mxu0 0.0
        %370 = vmatpush1.msra.mxu0 0.0
        %371 = vmatprep.subr.mxu0 0.0
        %372 = vmatpush1.msra.mxu0 %v339
        %373 = vmatprep.subr.mxu0 0.0
        %374 = vmatpush2.msra.mxu0 0.0
        %375 = vmatprep.subr.mxu0 0.0
        %376 = vmatpush2.msra.mxu0 0.0
        %377 = vmatprep.subr.mxu0 0.0
        %378 = vmatpush2.msra.mxu0 0.0
        %379 = vmatprep.subr.mxu0 0.0
        %380 = vmatpush2.msra.mxu0 0.0
        %381 = vmatprep.subr.mxu0 0.0
        %382 = vmatpush2.msra.mxu0 0.0
        %383 = vmatprep.subr.mxu0 0.0
        %384 = vmatpush2.msra.mxu0 0.0
        %385 = vmatprep.subr.mxu0 0.0
        %386 = vmatpush2.msra.mxu0 0.0
        %387 = vmatprep.subr.mxu0 0.0
        %388 = vmatpush2.msra.mxu0 0.0
        %389 = vmatprep.subr.mxu0 0.0
        %390 = vmatpush2.msra.mxu0 0.0
        %391 = vmatprep.subr.mxu0 0.0
        %392 = vmatpush2.msra.mxu0 0.0
        %393 = vmatprep.subr.mxu0 0.0
        %394 = vmatpush2.msra.mxu0 0.0
        %395 = vmatprep.subr.mxu0 0.0
        %396 = vmatpush2.msra.mxu0 0.0
        %397 = vmatprep.subr.mxu0 0.0
        %398 = vmatpush2.msra.mxu0 0.0
        %399 = vmatprep.subr.mxu0 0.0
        %400 = vmatpush2.msra.mxu0 0.0
        %401 = vmatprep.subr.mxu0 0.0
        %402 = vmatpush2.msra.mxu0 0.0
        %403 = vmatprep.subr.mxu0 0.0
        %404 = vmatpush2.msra.mxu0 0.0
        %405 = vmatprep.mubr.f32.mxu0 0.0
        %406 = vmatmul.mubr.f32.gmra.mxu0 %v242
        %v407 = vpop.f32.mrf.mxu0
        %v408 = vadd.f32 0.0, %v407
        %v409 = vpop.f32.mrf.mxu0
        %410 = vmatprep.mubr.f32.mxu0 0.0
        %411 = vmatmul.mubr.f32.gmra.mxu0 %v245
        %v412 = vpop.f32.mrf.mxu0
        %v413 = vadd.f32 0.0, %v412
        %v414 = vpop.f32.mrf.mxu0
        %415 = vmatprep.mubr.f32.mxu0 0.0
        %416 = vmatmul.mubr.f32.gmra.mxu0 %v248
        %v417 = vpop.f32.mrf.mxu0
        %v418 = vadd.f32 0.0, %v417
        %v419 = vpop.f32.mrf.mxu0
        %420 = vmatprep.mubr.f32.mxu0 0.0
        %421 = vmatmul.mubr.f32.gmra.mxu0 %v251
        %v422 = vpop.f32.mrf.mxu0
        %v423 = vadd.f32 0.0, %v422
        %v424 = vpop.f32.mrf.mxu0
        %425 = vmatprep.mubr.f32.mxu0 0.0
        %426 = vmatmul.mubr.f32.gmra.mxu0 %v254
        %v427 = vpop.f32.mrf.mxu0
        %v428 = vadd.f32 0.0, %v427
        %v429 = vpop.f32.mrf.mxu0
        %430 = vmatprep.mubr.f32.mxu0 0.0
        %431 = vmatmul.mubr.f32.gmra.mxu0 %v257
        %v432 = vpop.f32.mrf.mxu0
        %v433 = vadd.f32 0.0, %v432
        %v434 = vpop.f32.mrf.mxu0
        %435 = vmatprep.mubr.f32.mxu0 0.0
        %436 = vmatmul.mubr.f32.gmra.mxu0 %v260
        %v437 = vpop.f32.mrf.mxu0
        %v438 = vadd.f32 0.0, %v437
        %v439 = vpop.f32.mrf.mxu0
        %440 = vmatprep.mubr.f32.mxu0 0.0
        %441 = vmatmul.mubr.f32.gmra.mxu0 %v263
        %v442 = vpop.f32.mrf.mxu0
        %v443 = vadd.f32 0.0, %v442
        %v444 = vpop.f32.mrf.mxu0
        %445 = vmatprep.mubr.f32.mxu0 0.0
        %446 = vmatmul.mubr.f32.gmra.mxu0 %v266
        %v447 = vpop.f32.mrf.mxu0
        %v448 = vadd.f32 0.0, %v447
        %v449 = vpop.f32.mrf.mxu0
        %450 = vmatprep.mubr.f32.mxu0 0.0
        %451 = vmatmul.mubr.f32.gmra.mxu0 %v269
        %v452 = vpop.f32.mrf.mxu0
        %v453 = vadd.f32 0.0, %v452
        %v454 = vpop.f32.mrf.mxu0
        %455 = vmatprep.mubr.f32.mxu0 0.0
        %456 = vmatmul.mubr.f32.gmra.mxu0 %v272
        %v457 = vpop.f32.mrf.mxu0
        %v458 = vadd.f32 0.0, %v457
        %v459 = vpop.f32.mrf.mxu0
        %460 = vmatprep.mubr.f32.mxu0 0.0
        %461 = vmatmul.mubr.f32.gmra.mxu0 %v275
        %v462 = vpop.f32.mrf.mxu0
        %v463 = vadd.f32 0.0, %v462
        %v464 = vpop.f32.mrf.mxu0
        %465 = vmatprep.mubr.f32.mxu0 0.0
        %466 = vmatmul.mubr.f32.gmra.mxu0 %v278
        %v467 = vpop.f32.mrf.mxu0
        %v468 = vadd.f32 0.0, %v467
        %v469 = vpop.f32.mrf.mxu0
        %470 = vmatprep.mubr.f32.mxu0 0.0
        %471 = vmatmul.mubr.f32.gmra.mxu0 %v281
        %v472 = vpop.f32.mrf.mxu0
        %v473 = vadd.f32 0.0, %v472
        %v474 = vpop.f32.mrf.mxu0
        %475 = vmatprep.mubr.f32.mxu0 0.0
        %476 = vmatmul.mubr.f32.gmra.mxu0 %v284
        %v477 = vpop.f32.mrf.mxu0
        %v478 = vadd.f32 0.0, %v477
        %v479 = vpop.f32.mrf.mxu0
        %480 = vmatprep.mubr.f32.mxu0 0.0
        %481 = vmatmul.mubr.f32.gmra.mxu0 %v287
        %v482 = vpop.f32.mrf.mxu0
        %v483 = vadd.f32 0.0, %v482
        %v484 = vpop.f32.mrf.mxu0
        %485 = vmatprep.mubr.f32.mxu0 0.0
        %486 = vmatmul.mubr.f32.gmra.mxu0 %v290
        %v487 = vpop.f32.mrf.mxu0
        %v488 = vadd.f32 0.0, %v487
        %v489 = vpop.f32.mrf.mxu0
        %490 = vmatprep.mubr.f32.mxu0 0.0
        %491 = vmatmul.mubr.f32.gmra.mxu0 %v293
        %v492 = vpop.f32.mrf.mxu0
        %v493 = vadd.f32 0.0, %v492
        %v494 = vpop.f32.mrf.mxu0
        %495 = vmatprep.mubr.f32.mxu0 0.0
        %496 = vmatmul.mubr.f32.gmra.mxu0 %v296
        %v497 = vpop.f32.mrf.mxu0
        %v498 = vadd.f32 0.0, %v497
        %v499 = vpop.f32.mrf.mxu0
        %500 = vmatprep.mubr.f32.mxu0 0.0
        %501 = vmatmul.mubr.f32.gmra.mxu0 %v299
        %v502 = vpop.f32.mrf.mxu0
        %v503 = vadd.f32 0.0, %v502
        %v504 = vpop.f32.mrf.mxu0
        %505 = vmatprep.mubr.f32.mxu0 0.0
        %506 = vmatmul.mubr.f32.gmra.mxu0 %v302
        %v507 = vpop.f32.mrf.mxu0
        %v508 = vadd.f32 0.0, %v507
        %v509 = vpop.f32.mrf.mxu0
        %510 = vmatprep.mubr.f32.mxu0 0.0
        %511 = vmatmul.mubr.f32.gmra.mxu0 %v305
        %v512 = vpop.f32.mrf.mxu0
        %v513 = vadd.f32 0.0, %v512
        %v514 = vpop.f32.mrf.mxu0
        %515 = vmatprep.mubr.f32.mxu0 0.0
        %516 = vmatmul.mubr.f32.gmra.mxu0 %v308
        %v517 = vpop.f32.mrf.mxu0
        %v518 = vadd.f32 0.0, %v517
        %v519 = vpop.f32.mrf.mxu0
        %520 = vmatprep.mubr.f32.mxu0 0.0
        %521 = vmatmul.mubr.f32.gmra.mxu0 %v311
        %v522 = vpop.f32.mrf.mxu0
        %v523 = vadd.f32 0.0, %v522
        %v524 = vpop.f32.mrf.mxu0
        %525 = vmatprep.mubr.f32.mxu0 0.0
        %526 = vmatmul.mubr.f32.gmra.mxu0 %v314
        %v527 = vpop.f32.mrf.mxu0
        %v528 = vadd.f32 0.0, %v527
        %v529 = vpop.f32.mrf.mxu0
        %530 = vmatprep.mubr.f32.mxu0 0.0
        %531 = vmatmul.mubr.f32.gmra.mxu0 %v317
        %v532 = vpop.f32.mrf.mxu0
        %v533 = vadd.f32 0.0, %v532
        %v534 = vpop.f32.mrf.mxu0
        %535 = vmatprep.mubr.f32.mxu0 0.0
        %536 = vmatmul.mubr.f32.gmra.mxu0 %v320
        %v537 = vpop.f32.mrf.mxu0
        %v538 = vadd.f32 0.0, %v537
        %v539 = vpop.f32.mrf.mxu0
        %540 = vmatprep.mubr.f32.mxu0 0.0
        %541 = vmatmul.mubr.f32.gmra.mxu0 %v323
        %v542 = vpop.f32.mrf.mxu0
        %v543 = vadd.f32 0.0, %v542
        %v544 = vpop.f32.mrf.mxu0
        %545 = vmatprep.mubr.f32.mxu0 0.0
        %546 = vmatmul.mubr.f32.gmra.mxu0 %v326
        %v547 = vpop.f32.mrf.mxu0
        %v548 = vadd.f32 0.0, %v547
        %v549 = vpop.f32.mrf.mxu0
        %550 = vmatprep.mubr.f32.mxu0 0.0
        %551 = vmatmul.mubr.f32.gmra.mxu0 %v329
        %v552 = vpop.f32.mrf.mxu0
        %v553 = vadd.f32 0.0, %v552
        %v554 = vpop.f32.mrf.mxu0
        %555 = vmatprep.mubr.f32.mxu0 0.0
        %556 = vmatmul.mubr.f32.gmra.mxu0 %v332
        %v557 = vpop.f32.mrf.mxu0
        %v558 = vadd.f32 0.0, %v557
        %v559 = vpop.f32.mrf.mxu0
        %560 = vmatprep.mubr.f32.mxu0 0.0
        %561 = vmatmul.mubr.f32.gmra.mxu0 %v335
        %v562 = vpop.f32.mrf.mxu0
        %v563 = vadd.f32 0.0, %v562
        %v564 = vpop.f32.mrf.mxu0
        %565 = vdwg.mxu0
        %v567 = vsel %vm240, %v173, 0
        %v570 = vsel %vm240, %v174, 0
        %v573 = vsel %vm240, %v175, 0
        %v576 = vsel %vm240, %v176, 0
        %v579 = vsel %vm240, %v177, 0
        %v582 = vsel %vm240, %v178, 0
        %v585 = vsel %vm240, %v179, 0
        %v588 = vsel %vm240, %v180, 0
        %v591 = vsel %vm240, %v181, 0
        %v594 = vsel %vm240, %v182, 0
        %v597 = vsel %vm240, %v183, 0
        %v600 = vsel %vm240, %v184, 0
        %v603 = vsel %vm240, %v185, 0
        %v606 = vsel %vm240, %v186, 0
        %v609 = vsel %vm240, %v187, 0
        %v612 = vsel %vm240, %v188, 0
        %v615 = vsel %vm240, %v189, 0
        %v618 = vsel %vm240, %v190, 0
        %v621 = vsel %vm240, %v191, 0
        %v624 = vsel %vm240, %v192, 0
        %v627 = vsel %vm240, %v193, 0
        %v630 = vsel %vm240, %v194, 0
        %v633 = vsel %vm240, %v195, 0
        %v636 = vsel %vm240, %v196, 0
        %v639 = vsel %vm240, %v197, 0
        %v642 = vsel %vm240, %v198, 0
        %v645 = vsel %vm240, %v199, 0
        %v648 = vsel %vm240, %v200, 0
        %v651 = vsel %vm240, %v201, 0
        %v654 = vsel %vm240, %v202, 0
        %v657 = vsel %vm240, %v203, 0
        %v660 = vsel %vm240, %v204, 0
        %v663 = vsel %vm337, %v205, 0
        %665 = vmatprep.subr.mxu0 0.0
        %666 = vmatpush1.msra.mxu0 0.0
        %667 = vmatprep.subr.mxu0 0.0
        %668 = vmatpush1.msra.mxu0 0.0
        %669 = vmatprep.subr.mxu0 0.0
        %670 = vmatpush1.msra.mxu0 0.0
        %671 = vmatprep.subr.mxu0 0.0
        %672 = vmatpush1.msra.mxu0 0.0
        %673 = vmatprep.subr.mxu0 0.0
        %674 = vmatpush1.msra.mxu0 0.0
        %675 = vmatprep.subr.mxu0 0.0
        %676 = vmatpush1.msra.mxu0 0.0
        %677 = vmatprep.subr.mxu0 0.0
        %678 = vmatpush1.msra.mxu0 0.0
        %679 = vmatprep.subr.mxu0 0.0
        %680 = vmatpush1.msra.mxu0 0.0
        %681 = vmatprep.subr.mxu0 0.0
        %682 = vmatpush1.msra.mxu0 0.0
        %683 = vmatprep.subr.mxu0 0.0
        %684 = vmatpush1.msra.mxu0 0.0
        %685 = vmatprep.subr.mxu0 0.0
        %686 = vmatpush1.msra.mxu0 0.0
        %687 = vmatprep.subr.mxu0 0.0
        %688 = vmatpush1.msra.mxu0 0.0
        %689 = vmatprep.subr.mxu0 0.0
        %690 = vmatpush1.msra.mxu0 0.0
        %691 = vmatprep.subr.mxu0 0.0
        %692 = vmatpush1.msra.mxu0 0.0
        %693 = vmatprep.subr.mxu0 0.0
        %694 = vmatpush1.msra.mxu0 0.0
        %695 = vmatprep.subr.mxu0 0.0
        %696 = vmatpush1.msra.mxu0 %v663
        %697 = vmatprep.subr.mxu0 0.0
        %698 = vmatpush2.msra.mxu0 0.0
        %699 = vmatprep.subr.mxu0 0.0
        %700 = vmatpush2.msra.mxu0 0.0
        %701 = vmatprep.subr.mxu0 0.0
        %702 = vmatpush2.msra.mxu0 0.0
        %703 = vmatprep.subr.mxu0 0.0
        %704 = vmatpush2.msra.mxu0 0.0
        %705 = vmatprep.subr.mxu0 0.0
        %706 = vmatpush2.msra.mxu0 0.0
        %707 = vmatprep.subr.mxu0 0.0
        %708 = vmatpush2.msra.mxu0 0.0
        %709 = vmatprep.subr.mxu0 0.0
        %710 = vmatpush2.msra.mxu0 0.0
        %711 = vmatprep.subr.mxu0 0.0
        %712 = vmatpush2.msra.mxu0 0.0
        %713 = vmatprep.subr.mxu0 0.0
        %714 = vmatpush2.msra.mxu0 0.0
        %715 = vmatprep.subr.mxu0 0.0
        %716 = vmatpush2.msra.mxu0 0.0
        %717 = vmatprep.subr.mxu0 0.0
        %718 = vmatpush2.msra.mxu0 0.0
        %719 = vmatprep.subr.mxu0 0.0
        %720 = vmatpush2.msra.mxu0 0.0
        %721 = vmatprep.subr.mxu0 0.0
        %722 = vmatpush2.msra.mxu0 0.0
        %723 = vmatprep.subr.mxu0 0.0
        %724 = vmatpush2.msra.mxu0 0.0
        %725 = vmatprep.subr.mxu0 0.0
        %726 = vmatpush2.msra.mxu0 0.0
        %727 = vmatprep.subr.mxu0 0.0
        %728 = vmatpush2.msra.mxu0 0.0
        %729 = vmatprep.mubr.f32.mxu0 0.0
        %730 = vmatmul.mubr.f32.gmra.mxu0 %v567
        %v731 = vpop.f32.mrf.mxu0
        %v732 = vadd.f32 %v408, %v731
        %v733 = vpop.f32.mrf.mxu0
        %734 = vmatprep.mubr.f32.mxu0 0.0
        %735 = vmatmul.mubr.f32.gmra.mxu0 %v570
        %v736 = vpop.f32.mrf.mxu0
        %v737 = vadd.f32 %v413, %v736
        %v738 = vpop.f32.mrf.mxu0
        %739 = vmatprep.mubr.f32.mxu0 0.0
        %740 = vmatmul.mubr.f32.gmra.mxu0 %v573
        %v741 = vpop.f32.mrf.mxu0
        %v742 = vadd.f32 %v418, %v741
        %v743 = vpop.f32.mrf.mxu0
        %744 = vmatprep.mubr.f32.mxu0 0.0
        %745 = vmatmul.mubr.f32.gmra.mxu0 %v576
        %v746 = vpop.f32.mrf.mxu0
        %v747 = vadd.f32 %v423, %v746
        %v748 = vpop.f32.mrf.mxu0
        %749 = vmatprep.mubr.f32.mxu0 0.0
        %750 = vmatmul.mubr.f32.gmra.mxu0 %v579
        %v751 = vpop.f32.mrf.mxu0
        %v752 = vadd.f32 %v428, %v751
        %v753 = vpop.f32.mrf.mxu0
        %754 = vmatprep.mubr.f32.mxu0 0.0
        %755 = vmatmul.mubr.f32.gmra.mxu0 %v582
        %v756 = vpop.f32.mrf.mxu0
        %v757 = vadd.f32 %v433, %v756
        %v758 = vpop.f32.mrf.mxu0
        %759 = vmatprep.mubr.f32.mxu0 0.0
        %760 = vmatmul.mubr.f32.gmra.mxu0 %v585
        %v761 = vpop.f32.mrf.mxu0
        %v762 = vadd.f32 %v438, %v761
        %v763 = vpop.f32.mrf.mxu0
        %764 = vmatprep.mubr.f32.mxu0 0.0
        %765 = vmatmul.mubr.f32.gmra.mxu0 %v588
        %v766 = vpop.f32.mrf.mxu0
        %v767 = vadd.f32 %v443, %v766
        %v768 = vpop.f32.mrf.mxu0
        %769 = vmatprep.mubr.f32.mxu0 0.0
        %770 = vmatmul.mubr.f32.gmra.mxu0 %v591
        %v771 = vpop.f32.mrf.mxu0
        %v772 = vadd.f32 %v448, %v771
        %v773 = vpop.f32.mrf.mxu0
        %774 = vmatprep.mubr.f32.mxu0 0.0
        %775 = vmatmul.mubr.f32.gmra.mxu0 %v594
        %v776 = vpop.f32.mrf.mxu0
        %v777 = vadd.f32 %v453, %v776
        %v778 = vpop.f32.mrf.mxu0
        %779 = vmatprep.mubr.f32.mxu0 0.0
        %780 = vmatmul.mubr.f32.gmra.mxu0 %v597
        %v781 = vpop.f32.mrf.mxu0
        %v782 = vadd.f32 %v458, %v781
        %v783 = vpop.f32.mrf.mxu0
        %784 = vmatprep.mubr.f32.mxu0 0.0
        %785 = vmatmul.mubr.f32.gmra.mxu0 %v600
        %v786 = vpop.f32.mrf.mxu0
        %v787 = vadd.f32 %v463, %v786
        %v788 = vpop.f32.mrf.mxu0
        %789 = vmatprep.mubr.f32.mxu0 0.0
        %790 = vmatmul.mubr.f32.gmra.mxu0 %v603
        %v791 = vpop.f32.mrf.mxu0
        %v792 = vadd.f32 %v468, %v791
        %v793 = vpop.f32.mrf.mxu0
        %794 = vmatprep.mubr.f32.mxu0 0.0
        %795 = vmatmul.mubr.f32.gmra.mxu0 %v606
        %v796 = vpop.f32.mrf.mxu0
        %v797 = vadd.f32 %v473, %v796
        %v798 = vpop.f32.mrf.mxu0
        %799 = vmatprep.mubr.f32.mxu0 0.0
        %800 = vmatmul.mubr.f32.gmra.mxu0 %v609
        %v801 = vpop.f32.mrf.mxu0
        %v802 = vadd.f32 %v478, %v801
        %v803 = vpop.f32.mrf.mxu0
        %804 = vmatprep.mubr.f32.mxu0 0.0
        %805 = vmatmul.mubr.f32.gmra.mxu0 %v612
        %v806 = vpop.f32.mrf.mxu0
        %v807 = vadd.f32 %v483, %v806
        %v808 = vpop.f32.mrf.mxu0
        %809 = vmatprep.mubr.f32.mxu0 0.0
        %810 = vmatmul.mubr.f32.gmra.mxu0 %v615
        %v811 = vpop.f32.mrf.mxu0
        %v812 = vadd.f32 %v488, %v811
        %v813 = vpop.f32.mrf.mxu0
        %814 = vmatprep.mubr.f32.mxu0 0.0
        %815 = vmatmul.mubr.f32.gmra.mxu0 %v618
        %v816 = vpop.f32.mrf.mxu0
        %v817 = vadd.f32 %v493, %v816
        %v818 = vpop.f32.mrf.mxu0
        %819 = vmatprep.mubr.f32.mxu0 0.0
        %820 = vmatmul.mubr.f32.gmra.mxu0 %v621
        %v821 = vpop.f32.mrf.mxu0
        %v822 = vadd.f32 %v498, %v821
        %v823 = vpop.f32.mrf.mxu0
        %824 = vmatprep.mubr.f32.mxu0 0.0
        %825 = vmatmul.mubr.f32.gmra.mxu0 %v624
        %v826 = vpop.f32.mrf.mxu0
        %v827 = vadd.f32 %v503, %v826
        %v828 = vpop.f32.mrf.mxu0
        %829 = vmatprep.mubr.f32.mxu0 0.0
        %830 = vmatmul.mubr.f32.gmra.mxu0 %v627
        %v831 = vpop.f32.mrf.mxu0
        %v832 = vadd.f32 %v508, %v831
        %v833 = vpop.f32.mrf.mxu0
        %834 = vmatprep.mubr.f32.mxu0 0.0
        %835 = vmatmul.mubr.f32.gmra.mxu0 %v630
        %v836 = vpop.f32.mrf.mxu0
        %v837 = vadd.f32 %v513, %v836
        %v838 = vpop.f32.mrf.mxu0
        %839 = vmatprep.mubr.f32.mxu0 0.0
        %840 = vmatmul.mubr.f32.gmra.mxu0 %v633
        %v841 = vpop.f32.mrf.mxu0
        %v842 = vadd.f32 %v518, %v841
        %v843 = vpop.f32.mrf.mxu0
        %844 = vmatprep.mubr.f32.mxu0 0.0
        %845 = vmatmul.mubr.f32.gmra.mxu0 %v636
        %v846 = vpop.f32.mrf.mxu0
        %v847 = vadd.f32 %v523, %v846
        %v848 = vpop.f32.mrf.mxu0
        %849 = vmatprep.mubr.f32.mxu0 0.0
        %850 = vmatmul.mubr.f32.gmra.mxu0 %v639
        %v851 = vpop.f32.mrf.mxu0
        %v852 = vadd.f32 %v528, %v851
        %v853 = vpop.f32.mrf.mxu0
        %854 = vmatprep.mubr.f32.mxu0 0.0
        %855 = vmatmul.mubr.f32.gmra.mxu0 %v642
        %v856 = vpop.f32.mrf.mxu0
        %v857 = vadd.f32 %v533, %v856
        %v858 = vpop.f32.mrf.mxu0
        %859 = vmatprep.mubr.f32.mxu0 0.0
        %860 = vmatmul.mubr.f32.gmra.mxu0 %v645
        %v861 = vpop.f32.mrf.mxu0
        %v862 = vadd.f32 %v538, %v861
        %v863 = vpop.f32.mrf.mxu0
        %864 = vmatprep.mubr.f32.mxu0 0.0
        %865 = vmatmul.mubr.f32.gmra.mxu0 %v648
        %v866 = vpop.f32.mrf.mxu0
        %v867 = vadd.f32 %v543, %v866
        %v868 = vpop.f32.mrf.mxu0
        %869 = vmatprep.mubr.f32.mxu0 0.0
        %870 = vmatmul.mubr.f32.gmra.mxu0 %v651
        %v871 = vpop.f32.mrf.mxu0
        %v872 = vadd.f32 %v548, %v871
        %v873 = vpop.f32.mrf.mxu0
        %874 = vmatprep.mubr.f32.mxu0 0.0
        %875 = vmatmul.mubr.f32.gmra.mxu0 %v654
        %v876 = vpop.f32.mrf.mxu0
        %v877 = vadd.f32 %v553, %v876
        %v878 = vpop.f32.mrf.mxu0
        %879 = vmatprep.mubr.f32.mxu0 0.0
        %880 = vmatmul.mubr.f32.gmra.mxu0 %v657
        %v881 = vpop.f32.mrf.mxu0
        %v882 = vadd.f32 %v558, %v881
        %v883 = vpop.f32.mrf.mxu0
        %884 = vmatprep.mubr.f32.mxu0 0.0
        %885 = vmatmul.mubr.f32.gmra.mxu0 %v660
        %v886 = vpop.f32.mrf.mxu0
        %v887 = vadd.f32 %v563, %v886
        %v888 = vpop.f32.mrf.mxu0
        %889 = vdwg.mxu0
        %v890 = vld [vmem:[%s168 + $0x2] sm:$0xff]
        %v891 = vld [vmem:[%s168 + $0xa] sm:$0xff]
        %v892 = vld [vmem:[%s168 + $0x1a] sm:$0xff]
        %v893 = vld [vmem:[%s168 + $0x22] sm:$0xff]
        %v894 = vld [vmem:[%s168 + $0x32] sm:$0xff]
        %v895 = vld [vmem:[%s168 + $0x3a] sm:$0xff]
        %v896 = vld [vmem:[%s168 + $0x4a] sm:$0xff]
        %v897 = vld [vmem:[%s168 + $0x52] sm:$0xff]
        %v898 = vld [vmem:[%s168 + $0x62] sm:$0xff]
        %v899 = vld [vmem:[%s168 + $0x6a] sm:$0xff]
        %v900 = vld [vmem:[%s168 + $0x7a] sm:$0xff]
        %v901 = vld [vmem:[%s168 + $0x82] sm:$0xff]
        %v902 = vld [vmem:[%s168 + $0x92] sm:$0xff]
        %v903 = vld [vmem:[%s168 + $0x9a] sm:$0xff]
        %v904 = vld [vmem:[%s168 + $0xaa] sm:$0xff]
        %v905 = vld [vmem:[%s168 + $0xb2] sm:$0xff]
        %v906 = vld [vmem:[%s168 + $0xc2] sm:$0xff]
        %v907 = vld [vmem:[%s168 + $0xca] sm:$0xff]
        %v908 = vld [vmem:[%s168 + $0xda] sm:$0xff]
        %v909 = vld [vmem:[%s168 + $0xe2] sm:$0xff]
        %v910 = vld [vmem:[%s168 + $0xf2] sm:$0xff]
        %v911 = vld [vmem:[%s168 + $0xfa] sm:$0xff]
        %v912 = vld [vmem:[%s168 + $0x10a] sm:$0xff]
        %v913 = vld [vmem:[%s168 + $0x112] sm:$0xff]
        %v914 = vld [vmem:[%s168 + $0x122] sm:$0xff]
        %v915 = vld [vmem:[%s168 + $0x12a] sm:$0xff]
        %v916 = vld [vmem:[%s168 + $0x13a] sm:$0xff]
        %v917 = vld [vmem:[%s168 + $0x142] sm:$0xff]
        %v918 = vld [vmem:[%s168 + $0x152] sm:$0xff]
        %v919 = vld [vmem:[%s168 + $0x15a] sm:$0xff]
        %v920 = vld [vmem:[%s168 + $0x16a] sm:$0xff]
        %v921 = vld [vmem:[%s168 + $0x172] sm:$0xff]
        %s922 = scalar_lea.vmem %s172, 8
        %v923 = vld [vmem:[%s922] sm:$0xf]
        %v925 = vsel %vm240, %v890, 0
        %v928 = vsel %vm240, %v891, 0
        %v931 = vsel %vm240, %v892, 0
        %v934 = vsel %vm240, %v893, 0
        %v937 = vsel %vm240, %v894, 0
        %v940 = vsel %vm240, %v895, 0
        %v943 = vsel %vm240, %v896, 0
        %v946 = vsel %vm240, %v897, 0
        %v949 = vsel %vm240, %v898, 0
        %v952 = vsel %vm240, %v899, 0
        %v955 = vsel %vm240, %v900, 0
        %v958 = vsel %vm240, %v901, 0
        %v961 = vsel %vm240, %v902, 0
        %v964 = vsel %vm240, %v903, 0
        %v967 = vsel %vm240, %v904, 0
        %v970 = vsel %vm240, %v905, 0
        %v973 = vsel %vm240, %v906, 0
        %v976 = vsel %vm240, %v907, 0
        %v979 = vsel %vm240, %v908, 0
        %v982 = vsel %vm240, %v909, 0
        %v985 = vsel %vm240, %v910, 0
        %v988 = vsel %vm240, %v911, 0
        %v991 = vsel %vm240, %v912, 0
        %v994 = vsel %vm240, %v913, 0
        %v997 = vsel %vm240, %v914, 0
        %v1000 = vsel %vm240, %v915, 0
        %v1003 = vsel %vm240, %v916, 0
        %v1006 = vsel %vm240, %v917, 0
        %v1009 = vsel %vm240, %v918, 0
        %v1012 = vsel %vm240, %v919, 0
        %v1015 = vsel %vm240, %v920, 0
        %v1018 = vsel %vm240, %v921, 0
        %v1021 = vsel %vm337, %v923, 0
        %1023 = vmatprep.subr.mxu0 0.0
        %1024 = vmatpush1.msra.mxu0 0.0
        %1025 = vmatprep.subr.mxu0 0.0
        %1026 = vmatpush1.msra.mxu0 0.0
        %1027 = vmatprep.subr.mxu0 0.0
        %1028 = vmatpush1.msra.mxu0 0.0
        %1029 = vmatprep.subr.mxu0 0.0
        %1030 = vmatpush1.msra.mxu0 0.0
        %1031 = vmatprep.subr.mxu0 0.0
        %1032 = vmatpush1.msra.mxu0 0.0
        %1033 = vmatprep.subr.mxu0 0.0
        %1034 = vmatpush1.msra.mxu0 0.0
        %1035 = vmatprep.subr.mxu0 0.0
        %1036 = vmatpush1.msra.mxu0 0.0
        %1037 = vmatprep.subr.mxu0 0.0
        %1038 = vmatpush1.msra.mxu0 0.0
        %1039 = vmatprep.subr.mxu0 0.0
        %1040 = vmatpush1.msra.mxu0 0.0
        %1041 = vmatprep.subr.mxu0 0.0
        %1042 = vmatpush1.msra.mxu0 0.0
        %1043 = vmatprep.subr.mxu0 0.0
        %1044 = vmatpush1.msra.mxu0 0.0
        %1045 = vmatprep.subr.mxu0 0.0
        %1046 = vmatpush1.msra.mxu0 0.0
        %1047 = vmatprep.subr.mxu0 0.0
        %1048 = vmatpush1.msra.mxu0 0.0
        %1049 = vmatprep.subr.mxu0 0.0
        %1050 = vmatpush1.msra.mxu0 0.0
        %1051 = vmatprep.subr.mxu0 0.0
        %1052 = vmatpush1.msra.mxu0 0.0
        %1053 = vmatprep.subr.mxu0 0.0
        %1054 = vmatpush1.msra.mxu0 %v1021
        %1055 = vmatprep.subr.mxu0 0.0
        %1056 = vmatpush2.msra.mxu0 0.0
        %1057 = vmatprep.subr.mxu0 0.0
        %1058 = vmatpush2.msra.mxu0 0.0
        %1059 = vmatprep.subr.mxu0 0.0
        %1060 = vmatpush2.msra.mxu0 0.0
        %1061 = vmatprep.subr.mxu0 0.0
        %1062 = vmatpush2.msra.mxu0 0.0
        %1063 = vmatprep.subr.mxu0 0.0
        %1064 = vmatpush2.msra.mxu0 0.0
        %1065 = vmatprep.subr.mxu0 0.0
        %1066 = vmatpush2.msra.mxu0 0.0
        %1067 = vmatprep.subr.mxu0 0.0
        %1068 = vmatpush2.msra.mxu0 0.0
        %1069 = vmatprep.subr.mxu0 0.0
        %1070 = vmatpush2.msra.mxu0 0.0
        %1071 = vmatprep.subr.mxu0 0.0
        %1072 = vmatpush2.msra.mxu0 0.0
        %1073 = vmatprep.subr.mxu0 0.0
        %1074 = vmatpush2.msra.mxu0 0.0
        %1075 = vmatprep.subr.mxu0 0.0
        %1076 = vmatpush2.msra.mxu0 0.0
        %1077 = vmatprep.subr.mxu0 0.0
        %1078 = vmatpush2.msra.mxu0 0.0
        %1079 = vmatprep.subr.mxu0 0.0
        %1080 = vmatpush2.msra.mxu0 0.0
        %1081 = vmatprep.subr.mxu0 0.0
        %1082 = vmatpush2.msra.mxu0 0.0
        %1083 = vmatprep.subr.mxu0 0.0
        %1084 = vmatpush2.msra.mxu0 0.0
        %1085 = vmatprep.subr.mxu0 0.0
        %1086 = vmatpush2.msra.mxu0 0.0
        %1087 = vmatprep.mubr.f32.mxu0 0.0
        %1088 = vmatmul.mubr.f32.gmra.mxu0 %v925
        %v1089 = vpop.f32.mrf.mxu0
        %v1090 = vadd.f32 0.0, %v1089
        %v1091 = vpop.f32.mrf.mxu0
        %1092 = vmatprep.mubr.f32.mxu0 0.0
        %1093 = vmatmul.mubr.f32.gmra.mxu0 %v928
        %v1094 = vpop.f32.mrf.mxu0
        %v1095 = vadd.f32 0.0, %v1094
        %v1096 = vpop.f32.mrf.mxu0
        %1097 = vmatprep.mubr.f32.mxu0 0.0
        %1098 = vmatmul.mubr.f32.gmra.mxu0 %v931
        %v1099 = vpop.f32.mrf.mxu0
        %v1100 = vadd.f32 0.0, %v1099
        %v1101 = vpop.f32.mrf.mxu0
        %1102 = vmatprep.mubr.f32.mxu0 0.0
        %1103 = vmatmul.mubr.f32.gmra.mxu0 %v934
        %v1104 = vpop.f32.mrf.mxu0
        %v1105 = vadd.f32 0.0, %v1104
        %v1106 = vpop.f32.mrf.mxu0
        %1107 = vmatprep.mubr.f32.mxu0 0.0
        %1108 = vmatmul.mubr.f32.gmra.mxu0 %v937
        %v1109 = vpop.f32.mrf.mxu0
        %v1110 = vadd.f32 0.0, %v1109
        %v1111 = vpop.f32.mrf.mxu0
        %1112 = vmatprep.mubr.f32.mxu0 0.0
        %1113 = vmatmul.mubr.f32.gmra.mxu0 %v940
        %v1114 = vpop.f32.mrf.mxu0
        %v1115 = vadd.f32 0.0, %v1114
        %v1116 = vpop.f32.mrf.mxu0
        %1117 = vmatprep.mubr.f32.mxu0 0.0
        %1118 = vmatmul.mubr.f32.gmra.mxu0 %v943
        %v1119 = vpop.f32.mrf.mxu0
        %v1120 = vadd.f32 0.0, %v1119
        %v1121 = vpop.f32.mrf.mxu0
        %1122 = vmatprep.mubr.f32.mxu0 0.0
        %1123 = vmatmul.mubr.f32.gmra.mxu0 %v946
        %v1124 = vpop.f32.mrf.mxu0
        %v1125 = vadd.f32 0.0, %v1124
        %v1126 = vpop.f32.mrf.mxu0
        %1127 = vmatprep.mubr.f32.mxu0 0.0
        %1128 = vmatmul.mubr.f32.gmra.mxu0 %v949
        %v1129 = vpop.f32.mrf.mxu0
        %v1130 = vadd.f32 0.0, %v1129
        %v1131 = vpop.f32.mrf.mxu0
        %1132 = vmatprep.mubr.f32.mxu0 0.0
        %1133 = vmatmul.mubr.f32.gmra.mxu0 %v952
        %v1134 = vpop.f32.mrf.mxu0
        %v1135 = vadd.f32 0.0, %v1134
        %v1136 = vpop.f32.mrf.mxu0
        %1137 = vmatprep.mubr.f32.mxu0 0.0
        %1138 = vmatmul.mubr.f32.gmra.mxu0 %v955
        %v1139 = vpop.f32.mrf.mxu0
        %v1140 = vadd.f32 0.0, %v1139
        %v1141 = vpop.f32.mrf.mxu0
        %1142 = vmatprep.mubr.f32.mxu0 0.0
        %1143 = vmatmul.mubr.f32.gmra.mxu0 %v958
        %v1144 = vpop.f32.mrf.mxu0
        %v1145 = vadd.f32 0.0, %v1144
        %v1146 = vpop.f32.mrf.mxu0
        %1147 = vmatprep.mubr.f32.mxu0 0.0
        %1148 = vmatmul.mubr.f32.gmra.mxu0 %v961
        %v1149 = vpop.f32.mrf.mxu0
        %v1150 = vadd.f32 0.0, %v1149
        %v1151 = vpop.f32.mrf.mxu0
        %1152 = vmatprep.mubr.f32.mxu0 0.0
        %1153 = vmatmul.mubr.f32.gmra.mxu0 %v964
        %v1154 = vpop.f32.mrf.mxu0
        %v1155 = vadd.f32 0.0, %v1154
        %v1156 = vpop.f32.mrf.mxu0
        %1157 = vmatprep.mubr.f32.mxu0 0.0
        %1158 = vmatmul.mubr.f32.gmra.mxu0 %v967
        %v1159 = vpop.f32.mrf.mxu0
        %v1160 = vadd.f32 0.0, %v1159
        %v1161 = vpop.f32.mrf.mxu0
        %1162 = vmatprep.mubr.f32.mxu0 0.0
        %1163 = vmatmul.mubr.f32.gmra.mxu0 %v970
        %v1164 = vpop.f32.mrf.mxu0
        %v1165 = vadd.f32 0.0, %v1164
        %v1166 = vpop.f32.mrf.mxu0
        %1167 = vmatprep.mubr.f32.mxu0 0.0
        %1168 = vmatmul.mubr.f32.gmra.mxu0 %v973
        %v1169 = vpop.f32.mrf.mxu0
        %v1170 = vadd.f32 0.0, %v1169
        %v1171 = vpop.f32.mrf.mxu0
        %1172 = vmatprep.mubr.f32.mxu0 0.0
        %1173 = vmatmul.mubr.f32.gmra.mxu0 %v976
        %v1174 = vpop.f32.mrf.mxu0
        %v1175 = vadd.f32 0.0, %v1174
        %v1176 = vpop.f32.mrf.mxu0
        %1177 = vmatprep.mubr.f32.mxu0 0.0
        %1178 = vmatmul.mubr.f32.gmra.mxu0 %v979
        %v1179 = vpop.f32.mrf.mxu0
        %v1180 = vadd.f32 0.0, %v1179
        %v1181 = vpop.f32.mrf.mxu0
        %1182 = vmatprep.mubr.f32.mxu0 0.0
        %1183 = vmatmul.mubr.f32.gmra.mxu0 %v982
        %v1184 = vpop.f32.mrf.mxu0
        %v1185 = vadd.f32 0.0, %v1184
        %v1186 = vpop.f32.mrf.mxu0
        %1187 = vmatprep.mubr.f32.mxu0 0.0
        %1188 = vmatmul.mubr.f32.gmra.mxu0 %v985
        %v1189 = vpop.f32.mrf.mxu0
        %v1190 = vadd.f32 0.0, %v1189
        %v1191 = vpop.f32.mrf.mxu0
        %1192 = vmatprep.mubr.f32.mxu0 0.0
        %1193 = vmatmul.mubr.f32.gmra.mxu0 %v988
        %v1194 = vpop.f32.mrf.mxu0
        %v1195 = vadd.f32 0.0, %v1194
        %v1196 = vpop.f32.mrf.mxu0
        %1197 = vmatprep.mubr.f32.mxu0 0.0
        %1198 = vmatmul.mubr.f32.gmra.mxu0 %v991
        %v1199 = vpop.f32.mrf.mxu0
        %v1200 = vadd.f32 0.0, %v1199
        %v1201 = vpop.f32.mrf.mxu0
        %1202 = vmatprep.mubr.f32.mxu0 0.0
        %1203 = vmatmul.mubr.f32.gmra.mxu0 %v994
        %v1204 = vpop.f32.mrf.mxu0
        %v1205 = vadd.f32 0.0, %v1204
        %v1206 = vpop.f32.mrf.mxu0
        %1207 = vmatprep.mubr.f32.mxu0 0.0
        %1208 = vmatmul.mubr.f32.gmra.mxu0 %v997
        %v1209 = vpop.f32.mrf.mxu0
        %v1210 = vadd.f32 0.0, %v1209
        %v1211 = vpop.f32.mrf.mxu0
        %1212 = vmatprep.mubr.f32.mxu0 0.0
        %1213 = vmatmul.mubr.f32.gmra.mxu0 %v1000
        %v1214 = vpop.f32.mrf.mxu0
        %v1215 = vadd.f32 0.0, %v1214
        %v1216 = vpop.f32.mrf.mxu0
        %1217 = vmatprep.mubr.f32.mxu0 0.0
        %1218 = vmatmul.mubr.f32.gmra.mxu0 %v1003
        %v1219 = vpop.f32.mrf.mxu0
        %v1220 = vadd.f32 0.0, %v1219
        %v1221 = vpop.f32.mrf.mxu0
        %1222 = vmatprep.mubr.f32.mxu0 0.0
        %1223 = vmatmul.mubr.f32.gmra.mxu0 %v1006
        %v1224 = vpop.f32.mrf.mxu0
        %v1225 = vadd.f32 0.0, %v1224
        %v1226 = vpop.f32.mrf.mxu0
        %1227 = vmatprep.mubr.f32.mxu0 0.0
        %1228 = vmatmul.mubr.f32.gmra.mxu0 %v1009
        %v1229 = vpop.f32.mrf.mxu0
        %v1230 = vadd.f32 0.0, %v1229
        %v1231 = vpop.f32.mrf.mxu0
        %1232 = vmatprep.mubr.f32.mxu0 0.0
        %1233 = vmatmul.mubr.f32.gmra.mxu0 %v1012
        %v1234 = vpop.f32.mrf.mxu0
        %v1235 = vadd.f32 0.0, %v1234
        %v1236 = vpop.f32.mrf.mxu0
        %1237 = vmatprep.mubr.f32.mxu0 0.0
        %1238 = vmatmul.mubr.f32.gmra.mxu0 %v1015
        %v1239 = vpop.f32.mrf.mxu0
        %v1240 = vadd.f32 0.0, %v1239
        %v1241 = vpop.f32.mrf.mxu0
        %1242 = vmatprep.mubr.f32.mxu0 0.0
        %1243 = vmatmul.mubr.f32.gmra.mxu0 %v1018
        %v1244 = vpop.f32.mrf.mxu0
        %v1245 = vadd.f32 0.0, %v1244
        %v1246 = vpop.f32.mrf.mxu0
        %1247 = vdwg.mxu0
        %v1248 = vadd.f32 %v732, %v1090
        %v1249 = vadd.f32 %v737, %v1095
        %v1250 = vadd.f32 %v742, %v1100
        %v1251 = vadd.f32 %v747, %v1105
        %v1252 = vadd.f32 %v752, %v1110
        %v1253 = vadd.f32 %v757, %v1115
        %v1254 = vadd.f32 %v762, %v1120
        %v1255 = vadd.f32 %v767, %v1125
        %v1256 = vadd.f32 %v772, %v1130
        %v1257 = vadd.f32 %v777, %v1135
        %v1258 = vadd.f32 %v782, %v1140
        %v1259 = vadd.f32 %v787, %v1145
        %v1260 = vadd.f32 %v792, %v1150
        %v1261 = vadd.f32 %v797, %v1155
        %v1262 = vadd.f32 %v802, %v1160
        %v1263 = vadd.f32 %v807, %v1165
        %v1264 = vadd.f32 %v812, %v1170
        %v1265 = vadd.f32 %v817, %v1175
        %v1266 = vadd.f32 %v822, %v1180
        %v1267 = vadd.f32 %v827, %v1185
        %v1268 = vadd.f32 %v832, %v1190
        %v1269 = vadd.f32 %v837, %v1195
        %v1270 = vadd.f32 %v842, %v1200
        %v1271 = vadd.f32 %v847, %v1205
        %v1272 = vadd.f32 %v852, %v1210
        %v1273 = vadd.f32 %v857, %v1215
        %v1274 = vadd.f32 %v862, %v1220
        %v1275 = vadd.f32 %v867, %v1225
        %v1276 = vadd.f32 %v872, %v1230
        %v1277 = vadd.f32 %v877, %v1235
        %v1278 = vadd.f32 %v882, %v1240
        %v1279 = vadd.f32 %v887, %v1245
        %s1280 = scalar_lea.vmem %s168, 24
        %v1281 = vld [vmem:[%s1280] sm:$0xff]
        %v1282 = vld [vmem:[%s1280 + $0x8] sm:$0xff]
        %v1283 = vld [vmem:[%s1280 + $0x18] sm:$0xff]
        %v1284 = vld [vmem:[%s1280 + $0x20] sm:$0xff]
        %v1285 = vld [vmem:[%s1280 + $0x30] sm:$0xff]
        %v1286 = vld [vmem:[%s1280 + $0x38] sm:$0xff]
        %v1287 = vld [vmem:[%s1280 + $0x48] sm:$0xff]
        %v1288 = vld [vmem:[%s1280 + $0x50] sm:$0xff]
        %v1289 = vld [vmem:[%s1280 + $0x60] sm:$0xff]
        %v1290 = vld [vmem:[%s1280 + $0x68] sm:$0xff]
        %v1291 = vld [vmem:[%s1280 + $0x78] sm:$0xff]
        %v1292 = vld [vmem:[%s1280 + $0x80] sm:$0xff]
        %v1293 = vld [vmem:[%s1280 + $0x90] sm:$0xff]
        %v1294 = vld [vmem:[%s1280 + $0x98] sm:$0xff]
        %v1295 = vld [vmem:[%s1280 + $0xa8] sm:$0xff]
        %v1296 = vld [vmem:[%s1280 + $0xb0] sm:$0xff]
        %v1297 = vld [vmem:[%s1280 + $0xc0] sm:$0xff]
        %v1298 = vld [vmem:[%s1280 + $0xc8] sm:$0xff]
        %v1299 = vld [vmem:[%s1280 + $0xd8] sm:$0xff]
        %v1300 = vld [vmem:[%s1280 + $0xe0] sm:$0xff]
        %v1301 = vld [vmem:[%s1280 + $0xf0] sm:$0xff]
        %v1302 = vld [vmem:[%s1280 + $0xf8] sm:$0xff]
        %v1303 = vld [vmem:[%s1280 + $0x108] sm:$0xff]
        %v1304 = vld [vmem:[%s1280 + $0x110] sm:$0xff]
        %v1305 = vld [vmem:[%s1280 + $0x120] sm:$0xff]
        %v1306 = vld [vmem:[%s1280 + $0x128] sm:$0xff]
        %v1307 = vld [vmem:[%s1280 + $0x138] sm:$0xff]
        %v1308 = vld [vmem:[%s1280 + $0x140] sm:$0xff]
        %v1309 = vld [vmem:[%s1280 + $0x150] sm:$0xff]
        %v1310 = vld [vmem:[%s1280 + $0x158] sm:$0xff]
        %v1311 = vld [vmem:[%s1280 + $0x168] sm:$0xff]
        %v1312 = vld [vmem:[%s1280 + $0x170] sm:$0xff]
        %s1313 = scalar_lea.vmem %s172, 12
        %v1314 = vld [vmem:[%s1313] sm:$0xf]
        %v1316 = vsel %vm240, %v1281, 0
        %v1319 = vsel %vm240, %v1282, 0
        %v1322 = vsel %vm240, %v1283, 0
        %v1325 = vsel %vm240, %v1284, 0
        %v1328 = vsel %vm240, %v1285, 0
        %v1331 = vsel %vm240, %v1286, 0
        %v1334 = vsel %vm240, %v1287, 0
        %v1337 = vsel %vm240, %v1288, 0
        %v1340 = vsel %vm240, %v1289, 0
        %v1343 = vsel %vm240, %v1290, 0
        %v1346 = vsel %vm240, %v1291, 0
        %v1349 = vsel %vm240, %v1292, 0
        %v1352 = vsel %vm240, %v1293, 0
        %v1355 = vsel %vm240, %v1294, 0
        %v1358 = vsel %vm240, %v1295, 0
        %v1361 = vsel %vm240, %v1296, 0
        %v1364 = vsel %vm240, %v1297, 0
        %v1367 = vsel %vm240, %v1298, 0
        %v1370 = vsel %vm240, %v1299, 0
        %v1373 = vsel %vm240, %v1300, 0
        %v1376 = vsel %vm240, %v1301, 0
        %v1379 = vsel %vm240, %v1302, 0
        %v1382 = vsel %vm240, %v1303, 0
        %v1385 = vsel %vm240, %v1304, 0
        %v1388 = vsel %vm240, %v1305, 0
        %v1391 = vsel %vm240, %v1306, 0
        %v1394 = vsel %vm240, %v1307, 0
        %v1397 = vsel %vm240, %v1308, 0
        %v1400 = vsel %vm240, %v1309, 0
        %v1403 = vsel %vm240, %v1310, 0
        %v1406 = vsel %vm240, %v1311, 0
        %v1409 = vsel %vm240, %v1312, 0
        %v1412 = vsel %vm337, %v1314, 0
        %1414 = vmatprep.subr.mxu0 0.0
        %1415 = vmatpush1.msra.mxu0 0.0
        %1416 = vmatprep.subr.mxu0 0.0
        %1417 = vmatpush1.msra.mxu0 0.0
        %1418 = vmatprep.subr.mxu0 0.0
        %1419 = vmatpush1.msra.mxu0 0.0
        %1420 = vmatprep.subr.mxu0 0.0
        %1421 = vmatpush1.msra.mxu0 0.0
        %1422 = vmatprep.subr.mxu0 0.0
        %1423 = vmatpush1.msra.mxu0 0.0
        %1424 = vmatprep.subr.mxu0 0.0
        %1425 = vmatpush1.msra.mxu0 0.0
        %1426 = vmatprep.subr.mxu0 0.0
        %1427 = vmatpush1.msra.mxu0 0.0
        %1428 = vmatprep.subr.mxu0 0.0
        %1429 = vmatpush1.msra.mxu0 0.0
        %1430 = vmatprep.subr.mxu0 0.0
        %1431 = vmatpush1.msra.mxu0 0.0
        %1432 = vmatprep.subr.mxu0 0.0
        %1433 = vmatpush1.msra.mxu0 0.0
        %1434 = vmatprep.subr.mxu0 0.0
        %1435 = vmatpush1.msra.mxu0 0.0
        %1436 = vmatprep.subr.mxu0 0.0
        %1437 = vmatpush1.msra.mxu0 0.0
        %1438 = vmatprep.subr.mxu0 0.0
        %1439 = vmatpush1.msra.mxu0 0.0
        %1440 = vmatprep.subr.mxu0 0.0
        %1441 = vmatpush1.msra.mxu0 0.0
        %1442 = vmatprep.subr.mxu0 0.0
        %1443 = vmatpush1.msra.mxu0 0.0
        %1444 = vmatprep.subr.mxu0 0.0
        %1445 = vmatpush1.msra.mxu0 %v1412
        %1446 = vmatprep.subr.mxu0 0.0
        %1447 = vmatpush2.msra.mxu0 0.0
        %1448 = vmatprep.subr.mxu0 0.0
        %1449 = vmatpush2.msra.mxu0 0.0
        %1450 = vmatprep.subr.mxu0 0.0
        %1451 = vmatpush2.msra.mxu0 0.0
        %1452 = vmatprep.subr.mxu0 0.0
        %1453 = vmatpush2.msra.mxu0 0.0
        %1454 = vmatprep.subr.mxu0 0.0
        %1455 = vmatpush2.msra.mxu0 0.0
        %1456 = vmatprep.subr.mxu0 0.0
        %1457 = vmatpush2.msra.mxu0 0.0
        %1458 = vmatprep.subr.mxu0 0.0
        %1459 = vmatpush2.msra.mxu0 0.0
        %1460 = vmatprep.subr.mxu0 0.0
        %1461 = vmatpush2.msra.mxu0 0.0
        %1462 = vmatprep.subr.mxu0 0.0
        %1463 = vmatpush2.msra.mxu0 0.0
        %1464 = vmatprep.subr.mxu0 0.0
        %1465 = vmatpush2.msra.mxu0 0.0
        %1466 = vmatprep.subr.mxu0 0.0
        %1467 = vmatpush2.msra.mxu0 0.0
        %1468 = vmatprep.subr.mxu0 0.0
        %1469 = vmatpush2.msra.mxu0 0.0
        %1470 = vmatprep.subr.mxu0 0.0
        %1471 = vmatpush2.msra.mxu0 0.0
        %1472 = vmatprep.subr.mxu0 0.0
        %1473 = vmatpush2.msra.mxu0 0.0
        %1474 = vmatprep.subr.mxu0 0.0
        %1475 = vmatpush2.msra.mxu0 0.0
        %1476 = vmatprep.subr.mxu0 0.0
        %1477 = vmatpush2.msra.mxu0 0.0
        %1478 = vmatprep.mubr.f32.mxu0 0.0
        %1479 = vmatmul.mubr.f32.gmra.mxu0 %v1316
        %v1480 = vpop.f32.mrf.mxu0
        %v1481 = vadd.f32 0.0, %v1480
        %v1482 = vpop.f32.mrf.mxu0
        %1483 = vmatprep.mubr.f32.mxu0 0.0
        %1484 = vmatmul.mubr.f32.gmra.mxu0 %v1319
        %v1485 = vpop.f32.mrf.mxu0
        %v1486 = vadd.f32 0.0, %v1485
        %v1487 = vpop.f32.mrf.mxu0
        %1488 = vmatprep.mubr.f32.mxu0 0.0
        %1489 = vmatmul.mubr.f32.gmra.mxu0 %v1322
        %v1490 = vpop.f32.mrf.mxu0
        %v1491 = vadd.f32 0.0, %v1490
        %v1492 = vpop.f32.mrf.mxu0
        %1493 = vmatprep.mubr.f32.mxu0 0.0
        %1494 = vmatmul.mubr.f32.gmra.mxu0 %v1325
        %v1495 = vpop.f32.mrf.mxu0
        %v1496 = vadd.f32 0.0, %v1495
        %v1497 = vpop.f32.mrf.mxu0
        %1498 = vmatprep.mubr.f32.mxu0 0.0
        %1499 = vmatmul.mubr.f32.gmra.mxu0 %v1328
        %v1500 = vpop.f32.mrf.mxu0
        %v1501 = vadd.f32 0.0, %v1500
        %v1502 = vpop.f32.mrf.mxu0
        %1503 = vmatprep.mubr.f32.mxu0 0.0
        %1504 = vmatmul.mubr.f32.gmra.mxu0 %v1331
        %v1505 = vpop.f32.mrf.mxu0
        %v1506 = vadd.f32 0.0, %v1505
        %v1507 = vpop.f32.mrf.mxu0
        %1508 = vmatprep.mubr.f32.mxu0 0.0
        %1509 = vmatmul.mubr.f32.gmra.mxu0 %v1334
        %v1510 = vpop.f32.mrf.mxu0
        %v1511 = vadd.f32 0.0, %v1510
        %v1512 = vpop.f32.mrf.mxu0
        %1513 = vmatprep.mubr.f32.mxu0 0.0
        %1514 = vmatmul.mubr.f32.gmra.mxu0 %v1337
        %v1515 = vpop.f32.mrf.mxu0
        %v1516 = vadd.f32 0.0, %v1515
        %v1517 = vpop.f32.mrf.mxu0
        %1518 = vmatprep.mubr.f32.mxu0 0.0
        %1519 = vmatmul.mubr.f32.gmra.mxu0 %v1340
        %v1520 = vpop.f32.mrf.mxu0
        %v1521 = vadd.f32 0.0, %v1520
        %v1522 = vpop.f32.mrf.mxu0
        %1523 = vmatprep.mubr.f32.mxu0 0.0
        %1524 = vmatmul.mubr.f32.gmra.mxu0 %v1343
        %v1525 = vpop.f32.mrf.mxu0
        %v1526 = vadd.f32 0.0, %v1525
        %v1527 = vpop.f32.mrf.mxu0
        %1528 = vmatprep.mubr.f32.mxu0 0.0
        %1529 = vmatmul.mubr.f32.gmra.mxu0 %v1346
        %v1530 = vpop.f32.mrf.mxu0
        %v1531 = vadd.f32 0.0, %v1530
        %v1532 = vpop.f32.mrf.mxu0
        %1533 = vmatprep.mubr.f32.mxu0 0.0
        %1534 = vmatmul.mubr.f32.gmra.mxu0 %v1349
        %v1535 = vpop.f32.mrf.mxu0
        %v1536 = vadd.f32 0.0, %v1535
        %v1537 = vpop.f32.mrf.mxu0
        %1538 = vmatprep.mubr.f32.mxu0 0.0
        %1539 = vmatmul.mubr.f32.gmra.mxu0 %v1352
        %v1540 = vpop.f32.mrf.mxu0
        %v1541 = vadd.f32 0.0, %v1540
        %v1542 = vpop.f32.mrf.mxu0
        %1543 = vmatprep.mubr.f32.mxu0 0.0
        %1544 = vmatmul.mubr.f32.gmra.mxu0 %v1355
        %v1545 = vpop.f32.mrf.mxu0
        %v1546 = vadd.f32 0.0, %v1545
        %v1547 = vpop.f32.mrf.mxu0
        %1548 = vmatprep.mubr.f32.mxu0 0.0
        %1549 = vmatmul.mubr.f32.gmra.mxu0 %v1358
        %v1550 = vpop.f32.mrf.mxu0
        %v1551 = vadd.f32 0.0, %v1550
        %v1552 = vpop.f32.mrf.mxu0
        %1553 = vmatprep.mubr.f32.mxu0 0.0
        %1554 = vmatmul.mubr.f32.gmra.mxu0 %v1361
        %v1555 = vpop.f32.mrf.mxu0
        %v1556 = vadd.f32 0.0, %v1555
        %v1557 = vpop.f32.mrf.mxu0
        %1558 = vmatprep.mubr.f32.mxu0 0.0
        %1559 = vmatmul.mubr.f32.gmra.mxu0 %v1364
        %v1560 = vpop.f32.mrf.mxu0
        %v1561 = vadd.f32 0.0, %v1560
        %v1562 = vpop.f32.mrf.mxu0
        %1563 = vmatprep.mubr.f32.mxu0 0.0
        %1564 = vmatmul.mubr.f32.gmra.mxu0 %v1367
        %v1565 = vpop.f32.mrf.mxu0
        %v1566 = vadd.f32 0.0, %v1565
        %v1567 = vpop.f32.mrf.mxu0
        %1568 = vmatprep.mubr.f32.mxu0 0.0
        %1569 = vmatmul.mubr.f32.gmra.mxu0 %v1370
        %v1570 = vpop.f32.mrf.mxu0
        %v1571 = vadd.f32 0.0, %v1570
        %v1572 = vpop.f32.mrf.mxu0
        %1573 = vmatprep.mubr.f32.mxu0 0.0
        %1574 = vmatmul.mubr.f32.gmra.mxu0 %v1373
        %v1575 = vpop.f32.mrf.mxu0
        %v1576 = vadd.f32 0.0, %v1575
        %v1577 = vpop.f32.mrf.mxu0
        %1578 = vmatprep.mubr.f32.mxu0 0.0
        %1579 = vmatmul.mubr.f32.gmra.mxu0 %v1376
        %v1580 = vpop.f32.mrf.mxu0
        %v1581 = vadd.f32 0.0, %v1580
        %v1582 = vpop.f32.mrf.mxu0
        %1583 = vmatprep.mubr.f32.mxu0 0.0
        %1584 = vmatmul.mubr.f32.gmra.mxu0 %v1379
        %v1585 = vpop.f32.mrf.mxu0
        %v1586 = vadd.f32 0.0, %v1585
        %v1587 = vpop.f32.mrf.mxu0
        %1588 = vmatprep.mubr.f32.mxu0 0.0
        %1589 = vmatmul.mubr.f32.gmra.mxu0 %v1382
        %v1590 = vpop.f32.mrf.mxu0
        %v1591 = vadd.f32 0.0, %v1590
        %v1592 = vpop.f32.mrf.mxu0
        %1593 = vmatprep.mubr.f32.mxu0 0.0
        %1594 = vmatmul.mubr.f32.gmra.mxu0 %v1385
        %v1595 = vpop.f32.mrf.mxu0
        %v1596 = vadd.f32 0.0, %v1595
        %v1597 = vpop.f32.mrf.mxu0
        %1598 = vmatprep.mubr.f32.mxu0 0.0
        %1599 = vmatmul.mubr.f32.gmra.mxu0 %v1388
        %v1600 = vpop.f32.mrf.mxu0
        %v1601 = vadd.f32 0.0, %v1600
        %v1602 = vpop.f32.mrf.mxu0
        %1603 = vmatprep.mubr.f32.mxu0 0.0
        %1604 = vmatmul.mubr.f32.gmra.mxu0 %v1391
        %v1605 = vpop.f32.mrf.mxu0
        %v1606 = vadd.f32 0.0, %v1605
        %v1607 = vpop.f32.mrf.mxu0
        %1608 = vmatprep.mubr.f32.mxu0 0.0
        %1609 = vmatmul.mubr.f32.gmra.mxu0 %v1394
        %v1610 = vpop.f32.mrf.mxu0
        %v1611 = vadd.f32 0.0, %v1610
        %v1612 = vpop.f32.mrf.mxu0
        %1613 = vmatprep.mubr.f32.mxu0 0.0
        %1614 = vmatmul.mubr.f32.gmra.mxu0 %v1397
        %v1615 = vpop.f32.mrf.mxu0
        %v1616 = vadd.f32 0.0, %v1615
        %v1617 = vpop.f32.mrf.mxu0
        %1618 = vmatprep.mubr.f32.mxu0 0.0
        %1619 = vmatmul.mubr.f32.gmra.mxu0 %v1400
        %v1620 = vpop.f32.mrf.mxu0
        %v1621 = vadd.f32 0.0, %v1620
        %v1622 = vpop.f32.mrf.mxu0
        %1623 = vmatprep.mubr.f32.mxu0 0.0
        %1624 = vmatmul.mubr.f32.gmra.mxu0 %v1403
        %v1625 = vpop.f32.mrf.mxu0
        %v1626 = vadd.f32 0.0, %v1625
        %v1627 = vpop.f32.mrf.mxu0
        %1628 = vmatprep.mubr.f32.mxu0 0.0
        %1629 = vmatmul.mubr.f32.gmra.mxu0 %v1406
        %v1630 = vpop.f32.mrf.mxu0
        %v1631 = vadd.f32 0.0, %v1630
        %v1632 = vpop.f32.mrf.mxu0
        %1633 = vmatprep.mubr.f32.mxu0 0.0
        %1634 = vmatmul.mubr.f32.gmra.mxu0 %v1409
        %v1635 = vpop.f32.mrf.mxu0
        %v1636 = vadd.f32 0.0, %v1635
        %v1637 = vpop.f32.mrf.mxu0
        %1638 = vdwg.mxu0
        %v1639 = vadd.f32 %v1248, %v1481
        %v1640 = vadd.f32 %v1249, %v1486
        %v1641 = vadd.f32 %v1250, %v1491
        %v1642 = vadd.f32 %v1251, %v1496
        %v1643 = vadd.f32 %v1252, %v1501
        %v1644 = vadd.f32 %v1253, %v1506
        %v1645 = vadd.f32 %v1254, %v1511
        %v1646 = vadd.f32 %v1255, %v1516
        %v1647 = vadd.f32 %v1256, %v1521
        %v1648 = vadd.f32 %v1257, %v1526
        %v1649 = vadd.f32 %v1258, %v1531
        %v1650 = vadd.f32 %v1259, %v1536
        %v1651 = vadd.f32 %v1260, %v1541
        %v1652 = vadd.f32 %v1261, %v1546
        %v1653 = vadd.f32 %v1262, %v1551
        %v1654 = vadd.f32 %v1263, %v1556
        %v1655 = vadd.f32 %v1264, %v1561
        %v1656 = vadd.f32 %v1265, %v1566
        %v1657 = vadd.f32 %v1266, %v1571
        %v1658 = vadd.f32 %v1267, %v1576
        %v1659 = vadd.f32 %v1268, %v1581
        %v1660 = vadd.f32 %v1269, %v1586
        %v1661 = vadd.f32 %v1270, %v1591
        %v1662 = vadd.f32 %v1271, %v1596
        %v1663 = vadd.f32 %v1272, %v1601
        %v1664 = vadd.f32 %v1273, %v1606
        %v1665 = vadd.f32 %v1274, %v1611
        %v1666 = vadd.f32 %v1275, %v1616
        %v1667 = vadd.f32 %v1276, %v1621
        %v1668 = vadd.f32 %v1277, %v1626
        %v1669 = vadd.f32 %v1278, %v1631
        %v1670 = vadd.f32 %v1279, %v1636
        %1671 = vst [vmem:[%s163] sm:$0xff] %v1639
        %1672 = vst [vmem:[%s163 + $0x8] sm:$0xff] %v1640
        %1673 = vst [vmem:[%s163 + $0x10] sm:$0xff] %v1641
        %1674 = vst [vmem:[%s163 + $0x18] sm:$0xff] %v1642
        %1675 = vst [vmem:[%s163 + $0x20] sm:$0xff] %v1643
        %1676 = vst [vmem:[%s163 + $0x28] sm:$0xff] %v1644
        %1677 = vst [vmem:[%s163 + $0x30] sm:$0xff] %v1645
        %1678 = vst [vmem:[%s163 + $0x38] sm:$0xff] %v1646
        %1679 = vst [vmem:[%s163 + $0x40] sm:$0xff] %v1647
        %1680 = vst [vmem:[%s163 + $0x48] sm:$0xff] %v1648
        %1681 = vst [vmem:[%s163 + $0x50] sm:$0xff] %v1649
        %1682 = vst [vmem:[%s163 + $0x58] sm:$0xff] %v1650
        %1683 = vst [vmem:[%s163 + $0x60] sm:$0xff] %v1651
        %1684 = vst [vmem:[%s163 + $0x68] sm:$0xff] %v1652
        %1685 = vst [vmem:[%s163 + $0x70] sm:$0xff] %v1653
        %1686 = vst [vmem:[%s163 + $0x78] sm:$0xff] %v1654
        %1687 = vst [vmem:[%s163 + $0x80] sm:$0xff] %v1655
        %1688 = vst [vmem:[%s163 + $0x88] sm:$0xff] %v1656
        %1689 = vst [vmem:[%s163 + $0x90] sm:$0xff] %v1657
        %1690 = vst [vmem:[%s163 + $0x98] sm:$0xff] %v1658
        %1691 = vst [vmem:[%s163 + $0xa0] sm:$0xff] %v1659
        %1692 = vst [vmem:[%s163 + $0xa8] sm:$0xff] %v1660
        %1693 = vst [vmem:[%s163 + $0xb0] sm:$0xff] %v1661
        %1694 = vst [vmem:[%s163 + $0xb8] sm:$0xff] %v1662
        %1695 = vst [vmem:[%s163 + $0xc0] sm:$0xff] %v1663
        %1696 = vst [vmem:[%s163 + $0xc8] sm:$0xff] %v1664
        %1697 = vst [vmem:[%s163 + $0xd0] sm:$0xff] %v1665
        %1698 = vst [vmem:[%s163 + $0xd8] sm:$0xff] %v1666
        %1699 = vst [vmem:[%s163 + $0xe0] sm:$0xff] %v1667
        %1700 = vst [vmem:[%s163 + $0xe8] sm:$0xff] %v1668
        %1701 = vst [vmem:[%s163 + $0xf0] sm:$0xff] %v1669
        %1702 = vst [vmem:[%s163 + $0xf8] sm:$0xff] %v1670
        %s1703 = sand.u32 %s90, 1
        %s1704 = scalar_lea.sflag [#allocation3], %s1703
        %s1705 = sand.u32 %s90, 1
        %s1706 = smul.addr %s1705, 256
        %s1707 = scalar_lea.vmem [#allocation2], %s1706
        // Predicated region
        $region29: #{tpu_custom_call.1} parent=27 // pred_check
          %p1708 = pneg %p100
        $region30: #{tpu_custom_call.1} parent=27 // pred_check_branch
          %1710 = sbr.rel (%p1708) target = $region32
        $region31: #{tpu_custom_call.1} parent=27 // pred_region
          %s1712 = ssub.s32 4096, 4096
          %1713 = vsyncadd %s1704, %s1712
          %s1714 = smul.addr %s20, 32
          %s1715 = sadd.s32 %s21, %s1714
          %s1716 = smul.addr %s1715, 128
          %s1717 = scalar_lea.hbm %s2, %s1716
          %s1718 = sshll.u32 %s1707, 4
          %s1719 = int_to_ptr.vmem [resolvable:$true] %s1718
          %1724 = dma.vmem_to_hbm [thread:$0]  %s1719, 4096, %s1717, %s1704, 128, 128, 8
        $region32: #{tpu_custom_call.1} parent=27 // pred_fallthru
          _
      $region28: #{tpu_custom_call.1} parent=5 // pred_fallthru
        _
      %p1725 = scmp.le.s32.totalorder 2, %s11
      // Predicated region
      $region33: #{tpu_custom_call.1} parent=5 // pred_check
        %p1726 = pneg %p1725
      $region34: #{tpu_custom_call.1} parent=5 // pred_check_branch
        %1728 = sbr.rel (%p1726) target = $region36
      $region35: #{tpu_custom_call.1} parent=5 // pred_region
        %s1729 = ssub.s32 %s11, 2
        // Predicated region
        $region37: #{tpu_custom_call.1} parent=35 // pred_check
          %p1730 = pneg %p106
        $region38: #{tpu_custom_call.1} parent=35 // pred_check_branch
          %1732 = sbr.rel (%p1730) target = $region40
        $region39: #{tpu_custom_call.1} parent=35 // pred_region
          %s1733 = sand.u32 %s91, 1
          %s1734 = scalar_lea.sflag [#allocation3], %s1733
          %s1735 = sand.u32 %s91, 1
          %s1736 = smul.addr %s1735, 256
          %s1737 = scalar_lea.vmem [#allocation2], %s1736
          %1738 = dma.done %s1734, 4096
        $region40: #{tpu_custom_call.1} parent=35 // pred_fallthru
          _
      $region36: #{tpu_custom_call.1} parent=5 // pred_fallthru
        _
    $region6: #{tpu_custom_call.1} parent=1 // loop_footer
      %s15 = sadd.s32 1, %s11
    $region7: #{tpu_custom_call.1} parent=1 // loop_footer_branch
      %10 = sbr.rel target = $region3
    $region8: #{tpu_custom_call.1} parent=1 // loop_exit
      _
    %1739 = vsyncpa [#allocation3], 1
    %s1740 = scalar_lea.sflag [#allocation3], 1
    %1741 = vsyncpa %s1740, 1

</llo_original>
